<compile_context>
chip_gen: v7x
topology: tpu7x:2x2x1
jax: 0.10.0
libtpu: 0.0.40
codegen_flags: <defaults>
</compile_context>

<pallas_src>
import functools

import jax
import jax.numpy as jnp
from jax.experimental import pallas as pl
from jax.experimental.pallas import tpu as pltpu

BN_EPS = 1e-5


# -----------------------------------------------------------------------------
# Fused kernel: upsample+reflectpad+conv1 -> zeropad+conv2 -> BN partial stats,
# B images per grid step, stacked along rows.
# -----------------------------------------------------------------------------
def _fused_conv_kernel(x_ref, rs_ref, b1_ref, b2_ref, bias1_ref, bias2_ref,
                       y_ref, s_ref, ss_ref, *, img_rows):
    """One block of B images.

    x_ref    : (B*H, W*Cin)           stacked input rows (channel-minor lanes)
    rs_ref   : (3, B*Ho, B*H)         block-diag row selection (upsample+reflect) per dh tap
    b1_ref   : (3, W*Cin, Wo*Cmid)    banded conv1 weights (column fusion folded in)
    b2_ref   : (3, Wo*Cmid, Wo*Cout)  banded conv2 weights (zero col pad folded in)
    bias1_ref/bias2_ref : (1, L1)/(1, L2)  f32 lane-tiled biases
    y_ref    : (B*Ho, Wo*Cout)        conv2 output (pre-BN), lane-dense
    s_ref/ss_ref : (1, 1, Wo*Cout)    per-block sum / sum of squares over rows
    img_rows : Ho (static) -- rows per image, for the per-image boundary mask
    """
    x = x_ref[...]                     # (B*H, W*Cin), compute dtype
    cd = x.dtype

    # --- conv1 (x2 nearest upsample + reflect pad folded in) ----------------
    # Associativity: acc1 = sum_d Rs_d @ (x @ B1_d).  The K = W*Cin matmul runs
    # on the small H-row stack; the row gather runs on its (smaller-K) output.
    acc1 = None
    for d in range(3):
        t = jnp.dot(x, b1_ref[d], preferred_element_type=jnp.float32).astype(cd)
        c = jnp.dot(rs_ref[d], t, preferred_element_type=jnp.float32)
        acc1 = c if acc1 is None else acc1 + c
    y1f = acc1 + bias1_ref[...]        # (B*Ho, L1) f32

    # --- conv2 (zero pad 1) --------------------------------------------------
    # Column taps / zero col-pad are folded into B2_d; the +-1 row taps are an
    # XLU roll plus a per-image boundary mask (zero row padding).
    n_rows = y1f.shape[0]
    r = jax.lax.broadcasted_iota(jnp.int32, (n_rows, 1), 0) % img_rows
    y1 = y1f.astype(cd)
    ys0 = jnp.where(r == 0, 0.0,
                    pltpu.roll(y1f, 1, axis=0)).astype(cd)            # reads row r-1
    ys2 = jnp.where(r == img_rows - 1, 0.0,
                    pltpu.roll(y1f, n_rows - 1, axis=0)).astype(cd)   # reads row r+1

    acc2 = jnp.dot(ys0, b2_ref[0], preferred_element_type=jnp.float32)
    acc2 = acc2 + jnp.dot(y1, b2_ref[1], preferred_element_type=jnp.float32)
    acc2 = acc2 + jnp.dot(ys2, b2_ref[2], preferred_element_type=jnp.float32)
    acc2 = acc2 + bias2_ref[...]       # (B*Ho, L2) f32

    y_ref[...] = acc2.astype(y_ref.dtype)                 # lane-dense (256) store
    s_ref[0] = jnp.sum(acc2, axis=0, keepdims=True)       # f32 partial stats
    ss_ref[0] = jnp.sum(acc2 * acc2, axis=0, keepdims=True)


# -----------------------------------------------------------------------------
# Wrapper-side construction of banded / selection matrices (traced once).
# -----------------------------------------------------------------------------
def _build_banded_params(w1_hwio, w2_hwio, b1, b2, H, W):
    Cin, Cmid = w1_hwio.shape[2], w1_hwio.shape[3]
    Cout = w2_hwio.shape[3]
    Ho, Wo = 2 * H, 2 * W
    taps = jnp.arange(3, dtype=jnp.int32)

    # Upsample(x2, nearest) + ReflectionPad2d(1): padded coord q -> original
    # column colmap[q] = [0, 0,0, 1,1, ..., W-1,W-1, W-1].
    colmap = jnp.concatenate([jnp.array([0], jnp.int32),
                              jnp.repeat(jnp.arange(W, dtype=jnp.int32), 2),
                              jnp.array([W - 1], jnp.int32)])
    # conv1: output column c, tap dw reads original column colmap[c + dw].
    j1 = colmap[jnp.arange(Wo, dtype=jnp.int32)[:, None] + taps[None, :]]      # (Wo, 3)
    sel1 = (j1[:, :, None] == jnp.arange(W)[None, None, :]).astype(jnp.float32)
    b1m = jnp.einsum('cdj,hdio->hjico', sel1, w1_hwio.astype(jnp.float32))
    b1m = b1m.reshape(3, W * Cin, Wo * Cmid)

    # conv2 (zero pad 1): output column c, tap dw reads conv1 column c+dw-1;
    # out-of-range taps never match -> zero columns = zero padding.
    j2 = jnp.arange(Wo, dtype=jnp.int32)[:, None] + taps[None, :] - 1           # (Wo, 3)
    valid2 = (j2 >= 0) & (j2 < Wo)
    sel2 = ((j2[:, :, None] == jnp.arange(Wo)[None, None, :])
            & valid2[:, :, None]).astype(jnp.float32)
    b2m = jnp.einsum('cdj,hdio->hjico', sel2, w2_hwio.astype(jnp.float32))
    b2m = b2m.reshape(3, Wo * Cmid, Wo * Cout)

    # Row selection for conv1 per tap d: rs3[d, r, i] = [rowmap(r + d) == i].
    rowmap = jnp.concatenate([jnp.array([0], jnp.int32),
                              jnp.repeat(jnp.arange(H, dtype=jnp.int32), 2),
                              jnp.array([H - 1], jnp.int32)])
    i1 = rowmap[taps[:, None] + jnp.arange(Ho, dtype=jnp.int32)[None, :]]       # (3, Ho)
    rs3 = (i1[:, :, None] == jnp.arange(H)[None, None, :]).astype(jnp.float32)  # (3, Ho, H)

    bias1_l = jnp.tile(b1.astype(jnp.float32), Wo).reshape(1, Wo * Cmid)
    bias2_l = jnp.tile(b2.astype(jnp.float32), Wo).reshape(1, Wo * Cout)
    return b1m, b2m, rs3, bias1_l, bias2_l


def _pick_block_n(n, target):
    """Largest divisor of n that is <= target (images per grid step)."""
    for b in range(min(n, target), 0, -1):
        if n % b == 0:
            return b
    return 1


# -----------------------------------------------------------------------------
# Full forward pass.
# -----------------------------------------------------------------------------
def double_upconv_unet_forward(x_nchw, params, *,
                               compute_dtype=jnp.float32,
                               intermediate_dtype=jnp.bfloat16,
                               block_n_target=8,
                               core_parallel=False):
    """Forward pass of DoubleUpconvUNet.

    compute_dtype      : activation/weight dtype for the MXU matmuls (f32 acc).
                         bfloat16 recommended on v5e/v6e/v7x.
    intermediate_dtype : HBM dtype of the pre-BN conv2 output (bf16 default).
    block_n_target     : images per fused grid step (amortizes step overhead).
    core_parallel      : on v7x, mark the batch grid axis CORE_PARALLEL (keep
                         block_n_target <= N/2 so the grid has >= 2 steps).
    """
    N, Cin, H, W = x_nchw.shape
    w1, w2 = params["w1"], params["w2"]            # HWIO
    Cmid, Cout = w1.shape[3], w2.shape[3]
    Ho, Wo = 2 * H, 2 * W
    L1, L2 = Wo * Cmid, Wo * Cout

    B = _pick_block_n(N, block_n_target)
    NB = N // B

    b1m, b2m, rs3, bias1_l, bias2_l = _build_banded_params(
        w1, w2, params["b1"], params["b2"], H, W)
    # Block-diagonal row-selection for B stacked images (traced once).
    eye_b = jnp.eye(B, dtype=jnp.float32)
    rsbig = jnp.stack([jnp.kron(eye_b, rs3[d]) for d in range(3)])  # (3, B*Ho, B*H)

    # NCHW -> (N*H, W*Cin): rows on sublanes, width*channels on lanes (glue).
    x2d = jnp.transpose(x_nchw, (0, 2, 3, 1)).reshape(N * H, W * Cin)

    cd = compute_dtype
    sems = (pltpu.CORE_PARALLEL,) if core_parallel else ("parallel",)
    kern = functools.partial(_fused_conv_kernel, img_rows=Ho)

    # Block footprint is ~1-2 MiB (<< default scoped VMEM on every generation),
    # so no explicit vmem_limit_bytes -- important for v7x's 64 MiB VMEM.
    y2, s, ss = pl.pallas_call(
        kern,
        grid=(NB,),
        in_specs=[
            pl.BlockSpec((B * H, W * Cin), lambda n: (n, 0)),
            pl.BlockSpec((3, B * Ho, B * H), lambda n: (0, 0, 0)),
            pl.BlockSpec((3, W * Cin, L1), lambda n: (0, 0, 0)),
            pl.BlockSpec((3, L1, L2), lambda n: (0, 0, 0)),
            pl.BlockSpec((1, L1), lambda n: (0, 0)),
            pl.BlockSpec((1, L2), lambda n: (0, 0)),
        ],
        out_specs=[
            pl.BlockSpec((B * Ho, L2), lambda n: (n, 0)),
            pl.BlockSpec((1, 1, L2), lambda n: (n, 0, 0)),
            pl.BlockSpec((1, 1, L2), lambda n: (n, 0, 0)),
        ],
        out_shape=[
            jax.ShapeDtypeStruct((N * Ho, L2), intermediate_dtype),
            jax.ShapeDtypeStruct((NB, 1, L2), jnp.float32),
            jax.ShapeDtypeStruct((NB, 1, L2), jnp.float32),
        ],
        compiler_params=pltpu.CompilerParams(dimension_semantics=sems),
    )(x2d.astype(cd), rsbig.astype(cd), b1m.astype(cd), b2m.astype(cd),
      bias1_l, bias2_l)

    # BatchNorm training-mode batch statistics (biased variance, eps=1e-5):
    # tiny per-channel reduction of the per-block partial sums, then the
    # scale/shift apply -- plain XLA, fuses into the final layout transpose.
    # TODO(synk): E[x^2]-E[x]^2 in f32 can lose precision for huge activation
    # means; a centered second pass would be more robust.
    m = N * Ho * Wo
    ch_sum = jnp.sum(s.reshape(NB, Wo, Cout), axis=(0, 1))
    ch_sqsum = jnp.sum(ss.reshape(NB, Wo, Cout), axis=(0, 1))
    mean = ch_sum / m
    var = jnp.maximum(ch_sqsum / m - mean * mean, 0.0)
    inv = jax.lax.rsqrt(var + BN_EPS)
    scale = params["gamma"].astype(jnp.float32) * inv
    shift = params["beta"].astype(jnp.float32) - mean * scale
    scale_l = jnp.tile(scale, Wo).reshape(1, L2)   # channel-minor, matches b2m lanes
    shift_l = jnp.tile(shift, Wo).reshape(1, L2)

    out = y2.astype(jnp.float32) * scale_l + shift_l          # (N*Ho, L2)
    out = out.reshape(N, Ho, Wo, Cout)
    return jnp.transpose(out, (0, 3, 1, 2))                   # NCHW


# -----------------------------------------------------------------------------
# Parameter init (PyTorch-shaped OIHW, converted to HWIO) and pure-JAX reference.
# -----------------------------------------------------------------------------
def init_params(key, in_channels, out_channels):
    mid = in_channels // 2
    k1, k2, k3, k4, k5, k6 = jax.random.split(key, 6)
    w1 = jax.random.normal(k1, (mid, in_channels, 3, 3), jnp.float32)
    w1 = w1 * (1.0 / (in_channels * 9) ** 0.5)
    b1 = 0.1 * jax.random.normal(k2, (mid,), jnp.float32)
    w2 = jax.random.normal(k3, (out_channels, mid, 3, 3), jnp.float32)
    w2 = w2 * (1.0 / (mid * 9) ** 0.5)
    b2 = 0.1 * jax.random.normal(k4, (out_channels,), jnp.float32)
    gamma = 1.0 + 0.1 * jax.random.normal(k5, (out_channels,), jnp.float32)
    beta = 0.1 * jax.random.normal(k6, (out_channels,), jnp.float32)
    return {
        "w1": jnp.transpose(w1, (2, 3, 1, 0)),  # HWIO
        "b1": b1,
        "w2": jnp.transpose(w2, (2, 3, 1, 0)),  # HWIO
        "b2": b2,
        "gamma": gamma,
        "beta": beta,
    }


def reference_forward(x_nchw, params):
    x = jnp.transpose(x_nchw, (0, 2, 3, 1))
    x = jnp.repeat(jnp.repeat(x, 2, axis=1), 2, axis=2)
    x = jnp.pad(x, ((0, 0), (1, 1), (1, 1), (0, 0)), mode="reflect")
    x = jax.lax.conv_general_dilated(
        x, params["w1"], (1, 1), "VALID",
        dimension_numbers=("NHWC", "HWIO", "NHWC")) + params["b1"]
    x = jax.lax.conv_general_dilated(
        x, params["w2"], (1, 1), "SAME",
        dimension_numbers=("NHWC", "HWIO", "NHWC")) + params["b2"]
    mean = jnp.mean(x, axis=(0, 1, 2), keepdims=True)
    var = jnp.mean((x - mean) ** 2, axis=(0, 1, 2), keepdims=True)
    x = (x - mean) * jax.lax.rsqrt(var + BN_EPS) * params["gamma"] + params["beta"]
    return jnp.transpose(x, (0, 3, 1, 2))


if __name__ == "__main__":
    in_channels, out_channels = 4, 8
    key = jax.random.PRNGKey(0)
    kx, kp = jax.random.split(key)
    x = jax.random.normal(kx, (2, in_channels, 16, 16), jnp.float32)
    params = init_params(kp, in_channels, out_channels)

    ref = jax.block_until_ready(reference_forward(x, params))

    # Default path: f32 compute, bf16 intermediate (stats & BN apply in f32).
    out = jax.block_until_ready(jax.jit(double_upconv_unet_forward)(x, params))
    assert out.shape == (2, out_channels, 32, 32), out.shape
    assert out.dtype == jnp.float32
    err = float(jnp.max(jnp.abs(out - ref)))
    assert err < 5e-2, f"default path max abs error vs reference: {err}"

    # Full f32 path (intermediate too): tight check of the fused math.
    fwd_f32 = jax.jit(functools.partial(double_upconv_unet_forward,
                                        intermediate_dtype=jnp.float32))
    out_f32 = jax.block_until_ready(fwd_f32(x, params))
    err_f32 = float(jnp.max(jnp.abs(out_f32 - ref)))
    assert err_f32 < 5e-3, f"f32 path max abs error vs reference: {err_f32}"

    # bf16 compute path: halves activation/weight HBM/VMEM bytes (recommended
    # on v5e/v6e/v7x; MXU accumulation and BN epilogue remain f32).
    fwd_bf16 = jax.jit(functools.partial(double_upconv_unet_forward,
                                         compute_dtype=jnp.bfloat16))
    out_bf16 = jax.block_until_ready(fwd_bf16(x, params))
    err_bf16 = float(jnp.max(jnp.abs(out_bf16 - ref)))
    assert err_bf16 < 0.25, f"bf16 path max abs error vs reference: {err_bf16}"

    print("KERNEL_OK")
</pallas_src>

<mosaic_0001>
module attributes {stable_mosaic.version = 11 : i64} {
  func.func @_fused_conv_kernel(%arg0: i32, %arg1: memref<32x64xf32, #tpu.memory_space<vmem>>, %arg2: memref<3x64x32xf32, #tpu.memory_space<vmem>>, %arg3: memref<3x64x64xf32, #tpu.memory_space<vmem>>, %arg4: memref<3x64x256xf32, #tpu.memory_space<vmem>>, %arg5: memref<1x64xf32, #tpu.memory_space<vmem>>, %arg6: memref<1x256xf32, #tpu.memory_space<vmem>>, %arg7: memref<64x256xbf16, #tpu.memory_space<vmem>>, %arg8: memref<1x1x256xf32, #tpu.memory_space<vmem>>, %arg9: memref<1x1x256xf32, #tpu.memory_space<vmem>>) attributes {dimension_semantics = [#tpu.dimension_semantics<parallel>], iteration_bounds = array<i64: 1>, scalar_prefetch = 0 : i64, scratch_operands = 0 : i64, tpu.core_type = #tpu.core_type<tc>, window_params = [{transform_indices = @transform_0, window_bounds = array<i64: 32, 64>}, {pipeline_mode = #tpu.pipeline_mode<synchronous>, transform_indices = @transform_1, window_bounds = array<i64: 3, 64, 32>}, {pipeline_mode = #tpu.pipeline_mode<synchronous>, transform_indices = @transform_2, window_bounds = array<i64: 3, 64, 64>}, {pipeline_mode = #tpu.pipeline_mode<synchronous>, transform_indices = @transform_3, window_bounds = array<i64: 3, 64, 256>}, {pipeline_mode = #tpu.pipeline_mode<synchronous>, transform_indices = @transform_4, window_bounds = array<i64: 1, 64>}, {pipeline_mode = #tpu.pipeline_mode<synchronous>, transform_indices = @transform_5, window_bounds = array<i64: 1, 256>}, {transform_indices = @transform_6, window_bounds = array<i64: 64, 256>}, {transform_indices = @transform_7, window_bounds = array<i64: 1, 1, 256>}, {transform_indices = @transform_8, window_bounds = array<i64: 1, 1, 256>}]} {
    %c0 = arith.constant 0 : index
    %c0_0 = arith.constant 0 : index
    %0 = vector.load %arg1[%c0, %c0_0] : memref<32x64xf32, #tpu.memory_space<vmem>>, vector<32x64xf32>
    %c0_1 = arith.constant 0 : index
    %c0_2 = arith.constant 0 : index
    %c0_3 = arith.constant 0 : index
    %1 = vector.load %arg3[%c0_1, %c0_2, %c0_3] : memref<3x64x64xf32, #tpu.memory_space<vmem>>, vector<1x64x64xf32>
    %2 = vector.shape_cast %1 : vector<1x64x64xf32> to vector<64x64xf32>
    %cst = arith.constant dense<0.000000e+00> : vector<32x64xf32>
    %3 = tpu.matmul %0, %2, %cst {dimension_numbers = #tpu.dot_dimension_numbers<[1], [0], [0], [1], [0, 0, 1, 1], [], []>} : vector<32x64xf32>, vector<64x64xf32>, vector<32x64xf32> -> vector<32x64xf32>
    %c0_4 = arith.constant 0 : index
    %c0_5 = arith.constant 0 : index
    %c0_6 = arith.constant 0 : index
    %4 = vector.load %arg2[%c0_4, %c0_5, %c0_6] : memref<3x64x32xf32, #tpu.memory_space<vmem>>, vector<1x64x32xf32>
    %5 = vector.shape_cast %4 : vector<1x64x32xf32> to vector<64x32xf32>
    %cst_7 = arith.constant dense<0.000000e+00> : vector<64x64xf32>
    %6 = tpu.matmul %5, %3, %cst_7 {dimension_numbers = #tpu.dot_dimension_numbers<[1], [0], [0], [1], [0, 0, 1, 1], [], []>} : vector<64x32xf32>, vector<32x64xf32>, vector<64x64xf32> -> vector<64x64xf32>
    %c1 = arith.constant 1 : index
    %c0_8 = arith.constant 0 : index
    %c0_9 = arith.constant 0 : index
    %7 = vector.load %arg3[%c1, %c0_8, %c0_9] : memref<3x64x64xf32, #tpu.memory_space<vmem>>, vector<1x64x64xf32>
    %8 = vector.shape_cast %7 : vector<1x64x64xf32> to vector<64x64xf32>
    %cst_10 = arith.constant dense<0.000000e+00> : vector<32x64xf32>
    %9 = tpu.matmul %0, %8, %cst_10 {dimension_numbers = #tpu.dot_dimension_numbers<[1], [0], [0], [1], [0, 0, 1, 1], [], []>} : vector<32x64xf32>, vector<64x64xf32>, vector<32x64xf32> -> vector<32x64xf32>
    %c1_11 = arith.constant 1 : index
    %c0_12 = arith.constant 0 : index
    %c0_13 = arith.constant 0 : index
    %10 = vector.load %arg2[%c1_11, %c0_12, %c0_13] : memref<3x64x32xf32, #tpu.memory_space<vmem>>, vector<1x64x32xf32>
    %11 = vector.shape_cast %10 : vector<1x64x32xf32> to vector<64x32xf32>
    %cst_14 = arith.constant dense<0.000000e+00> : vector<64x64xf32>
    %12 = tpu.matmul %11, %9, %cst_14 {dimension_numbers = #tpu.dot_dimension_numbers<[1], [0], [0], [1], [0, 0, 1, 1], [], []>} : vector<64x32xf32>, vector<32x64xf32>, vector<64x64xf32> -> vector<64x64xf32>
    %13 = arith.addf %6, %12 : vector<64x64xf32>
    %c2 = arith.constant 2 : index
    %c0_15 = arith.constant 0 : index
    %c0_16 = arith.constant 0 : index
    %14 = vector.load %arg3[%c2, %c0_15, %c0_16] : memref<3x64x64xf32, #tpu.memory_space<vmem>>, vector<1x64x64xf32>
    %15 = vector.shape_cast %14 : vector<1x64x64xf32> to vector<64x64xf32>
    %cst_17 = arith.constant dense<0.000000e+00> : vector<32x64xf32>
    %16 = tpu.matmul %0, %15, %cst_17 {dimension_numbers = #tpu.dot_dimension_numbers<[1], [0], [0], [1], [0, 0, 1, 1], [], []>} : vector<32x64xf32>, vector<64x64xf32>, vector<32x64xf32> -> vector<32x64xf32>
    %c2_18 = arith.constant 2 : index
    %c0_19 = arith.constant 0 : index
    %c0_20 = arith.constant 0 : index
    %17 = vector.load %arg2[%c2_18, %c0_19, %c0_20] : memref<3x64x32xf32, #tpu.memory_space<vmem>>, vector<1x64x32xf32>
    %18 = vector.shape_cast %17 : vector<1x64x32xf32> to vector<64x32xf32>
    %cst_21 = arith.constant dense<0.000000e+00> : vector<64x64xf32>
    %19 = tpu.matmul %18, %16, %cst_21 {dimension_numbers = #tpu.dot_dimension_numbers<[1], [0], [0], [1], [0, 0, 1, 1], [], []>} : vector<64x32xf32>, vector<32x64xf32>, vector<64x64xf32> -> vector<64x64xf32>
    %20 = arith.addf %13, %19 : vector<64x64xf32>
    %c0_22 = arith.constant 0 : index
    %c0_23 = arith.constant 0 : index
    %21 = vector.load %arg5[%c0_22, %c0_23] : memref<1x64xf32, #tpu.memory_space<vmem>>, vector<1x64xf32>
    %22 = vector.broadcast %21 : vector<1x64xf32> to vector<64x64xf32>
    %23 = arith.addf %20, %22 : vector<64x64xf32>
    %24 = tpu.iota {dimensions = array<i32: 0>} : vector<64x1xi32>
    %c32_i32 = arith.constant 32 : i32
    %c0_i32 = arith.constant 0 : i32
    %25 = arith.cmpi eq, %c32_i32, %c0_i32 : i32
    %c1_i32 = arith.constant 1 : i32
    %26 = arith.select %25, %c1_i32, %c32_i32 : i32
    %27 = vector.broadcast %26 : i32 to vector<64x1xi32>
    %28 = arith.remsi %24, %27 : vector<64x1xi32>
    %c0_i32_24 = arith.constant 0 : i32
    %29 = vector.broadcast %c0_i32_24 : i32 to vector<64x1xi32>
    %30 = arith.cmpi ne, %28, %29 : vector<64x1xi32>
    %c0_i32_25 = arith.constant 0 : i32
    %31 = vector.broadcast %c0_i32_25 : i32 to vector<64x1xi32>
    %32 = arith.cmpi slt, %28, %31 : vector<64x1xi32>
    %c0_i32_26 = arith.constant 0 : i32
    %33 = arith.cmpi slt, %26, %c0_i32_26 : i32
    %34 = vector.broadcast %33 : i1 to vector<64x1xi1>
    %35 = vector.broadcast %34 : vector<64x1xi1> to vector<64x1xi1>
    %36 = arith.xori %32, %35 : vector<64x1xi1>
    %37 = arith.andi %36, %30 : vector<64x1xi1>
    %38 = vector.broadcast %26 : i32 to vector<64x1xi32>
    %39 = arith.addi %28, %38 : vector<64x1xi32>
    %40 = arith.select %37, %39, %28 : vector<64x1xi1>, vector<64x1xi32>
    %c0_i32_27 = arith.constant 0 : i32
    %41 = vector.broadcast %c0_i32_27 : i32 to vector<64x1xi32>
    %42 = arith.cmpi eq, %40, %41 : vector<64x1xi32>
    %c1_i32_28 = arith.constant 1 : i32
    %43 = tpu.dynamic_rotate %23 by %c1_i32_28 dim 0 : vector<64x64xf32>, i32 -> vector<64x64xf32>
    %cst_29 = arith.constant 0.000000e+00 : f32
    %44 = vector.shape_cast %42 : vector<64x1xi1> to vector<64x1xi1>
    %45 = vector.broadcast %44 : vector<64x1xi1> to vector<64x64xi1>
    %46 = vector.broadcast %cst_29 : f32 to vector<64x64xf32>
    %47 = arith.select %45, %46, %43 : vector<64x64xi1>, vector<64x64xf32>
    %c31_i32 = arith.constant 31 : i32
    %48 = vector.broadcast %c31_i32 : i32 to vector<64x1xi32>
    %49 = arith.cmpi eq, %40, %48 : vector<64x1xi32>
    %c63_i32 = arith.constant 63 : i32
    %50 = tpu.dynamic_rotate %23 by %c63_i32 dim 0 : vector<64x64xf32>, i32 -> vector<64x64xf32>
    %cst_30 = arith.constant 0.000000e+00 : f32
    %51 = vector.shape_cast %49 : vector<64x1xi1> to vector<64x1xi1>
    %52 = vector.broadcast %51 : vector<64x1xi1> to vector<64x64xi1>
    %53 = vector.broadcast %cst_30 : f32 to vector<64x64xf32>
    %54 = arith.select %52, %53, %50 : vector<64x64xi1>, vector<64x64xf32>
    %c0_31 = arith.constant 0 : index
    %c0_32 = arith.constant 0 : index
    %c0_33 = arith.constant 0 : index
    %55 = vector.load %arg4[%c0_31, %c0_32, %c0_33] : memref<3x64x256xf32, #tpu.memory_space<vmem>>, vector<1x64x256xf32>
    %56 = vector.shape_cast %55 : vector<1x64x256xf32> to vector<64x256xf32>
    %cst_34 = arith.constant dense<0.000000e+00> : vector<64x256xf32>
    %57 = tpu.matmul %47, %56, %cst_34 {dimension_numbers = #tpu.dot_dimension_numbers<[1], [0], [0], [1], [0, 0, 1, 1], [], []>} : vector<64x64xf32>, vector<64x256xf32>, vector<64x256xf32> -> vector<64x256xf32>
    %c1_35 = arith.constant 1 : index
    %c0_36 = arith.constant 0 : index
    %c0_37 = arith.constant 0 : index
    %58 = vector.load %arg4[%c1_35, %c0_36, %c0_37] : memref<3x64x256xf32, #tpu.memory_space<vmem>>, vector<1x64x256xf32>
    %59 = vector.shape_cast %58 : vector<1x64x256xf32> to vector<64x256xf32>
    %cst_38 = arith.constant dense<0.000000e+00> : vector<64x256xf32>
    %60 = tpu.matmul %23, %59, %cst_38 {dimension_numbers = #tpu.dot_dimension_numbers<[1], [0], [0], [1], [0, 0, 1, 1], [], []>} : vector<64x64xf32>, vector<64x256xf32>, vector<64x256xf32> -> vector<64x256xf32>
    %61 = arith.addf %57, %60 : vector<64x256xf32>
    %c2_39 = arith.constant 2 : index
    %c0_40 = arith.constant 0 : index
    %c0_41 = arith.constant 0 : index
    %62 = vector.load %arg4[%c2_39, %c0_40, %c0_41] : memref<3x64x256xf32, #tpu.memory_space<vmem>>, vector<1x64x256xf32>
    %63 = vector.shape_cast %62 : vector<1x64x256xf32> to vector<64x256xf32>
    %cst_42 = arith.constant dense<0.000000e+00> : vector<64x256xf32>
    %64 = tpu.matmul %54, %63, %cst_42 {dimension_numbers = #tpu.dot_dimension_numbers<[1], [0], [0], [1], [0, 0, 1, 1], [], []>} : vector<64x64xf32>, vector<64x256xf32>, vector<64x256xf32> -> vector<64x256xf32>
    %65 = arith.addf %61, %64 : vector<64x256xf32>
    %c0_43 = arith.constant 0 : index
    %c0_44 = arith.constant 0 : index
    %66 = vector.load %arg6[%c0_43, %c0_44] : memref<1x256xf32, #tpu.memory_space<vmem>>, vector<1x256xf32>
    %67 = vector.broadcast %66 : vector<1x256xf32> to vector<64x256xf32>
    %68 = arith.addf %65, %67 : vector<64x256xf32>
    %69 = arith.truncf %68 : vector<64x256xf32> to vector<64x256xbf16>
    %c0_45 = arith.constant 0 : index
    %c0_46 = arith.constant 0 : index
    %70 = vector.load %arg7[%c0_45, %c0_46] : memref<64x256xbf16, #tpu.memory_space<vmem>>, vector<64x256xbf16>
    tpu.vector_store %arg7[%c0_45, %c0_46], %69 {strides = array<i32>} : memref<64x256xbf16, #tpu.memory_space<vmem>>, vector<64x256xbf16>,
    %cst_47 = arith.constant dense<0.000000e+00> : vector<256xf32>
    %71 = vector.multi_reduction <add>, %68, %cst_47 [0] : vector<64x256xf32> to vector<256xf32>
    %72 = vector.shape_cast %71 : vector<256xf32> to vector<1x256xf32>
    %c0_48 = arith.constant 0 : index
    %c0_49 = arith.constant 0 : index
    %c0_50 = arith.constant 0 : index
    %73 = vector.load %arg8[%c0_48, %c0_49, %c0_50] : memref<1x1x256xf32, #tpu.memory_space<vmem>>, vector<1x1x256xf32>
    %74 = vector.shape_cast %73 : vector<1x1x256xf32> to vector<1x256xf32>
    %75 = vector.shape_cast %72 : vector<1x256xf32> to vector<1x1x256xf32>
    tpu.vector_store %arg8[%c0_48, %c0_49, %c0_50], %75 {strides = array<i32>} : memref<1x1x256xf32, #tpu.memory_space<vmem>>, vector<1x1x256xf32>,
    %76 = arith.mulf %68, %68 : vector<64x256xf32>
    %cst_51 = arith.constant dense<0.000000e+00> : vector<256xf32>
    %77 = vector.multi_reduction <add>, %76, %cst_51 [0] : vector<64x256xf32> to vector<256xf32>
    %78 = vector.shape_cast %77 : vector<256xf32> to vector<1x256xf32>
    %c0_52 = arith.constant 0 : index
    %c0_53 = arith.constant 0 : index
    %c0_54 = arith.constant 0 : index
    %79 = vector.load %arg9[%c0_52, %c0_53, %c0_54] : memref<1x1x256xf32, #tpu.memory_space<vmem>>, vector<1x1x256xf32>
    %80 = vector.shape_cast %79 : vector<1x1x256xf32> to vector<1x256xf32>
    %81 = vector.shape_cast %78 : vector<1x256xf32> to vector<1x1x256xf32>
    tpu.vector_store %arg9[%c0_52, %c0_53, %c0_54], %81 {strides = array<i32>} : memref<1x1x256xf32, #tpu.memory_space<vmem>>, vector<1x1x256xf32>,
    return
  }
  func.func @transform_0(%arg0: i32) -> (i32, i32) {
    %c0_i32 = arith.constant 0 : i32
    %c0_i32_0 = arith.constant 0 : i32
    return %arg0, %c0_i32 : i32, i32
  }
  func.func @transform_1(%arg0: i32) -> (i32, i32, i32) {
    %c0_i32 = arith.constant 0 : i32
    %c0_i32_0 = arith.constant 0 : i32
    %c0_i32_1 = arith.constant 0 : i32
    %c0_i32_2 = arith.constant 0 : i32
    return %c0_i32, %c0_i32_0, %c0_i32_1 : i32, i32, i32
  }
  func.func @transform_2(%arg0: i32) -> (i32, i32, i32) {
    %c0_i32 = arith.constant 0 : i32
    %c0_i32_0 = arith.constant 0 : i32
    %c0_i32_1 = arith.constant 0 : i32
    %c0_i32_2 = arith.constant 0 : i32
    return %c0_i32, %c0_i32_0, %c0_i32_1 : i32, i32, i32
  }
  func.func @transform_3(%arg0: i32) -> (i32, i32, i32) {
    %c0_i32 = arith.constant 0 : i32
    %c0_i32_0 = arith.constant 0 : i32
    %c0_i32_1 = arith.constant 0 : i32
    %c0_i32_2 = arith.constant 0 : i32
    return %c0_i32, %c0_i32_0, %c0_i32_1 : i32, i32, i32
  }
  func.func @transform_4(%arg0: i32) -> (i32, i32) {
    %c0_i32 = arith.constant 0 : i32
    %c0_i32_0 = arith.constant 0 : i32
    %c0_i32_1 = arith.constant 0 : i32
    return %c0_i32, %c0_i32_0 : i32, i32
  }
  func.func @transform_5(%arg0: i32) -> (i32, i32) {
    %c0_i32 = arith.constant 0 : i32
    %c0_i32_0 = arith.constant 0 : i32
    %c0_i32_1 = arith.constant 0 : i32
    return %c0_i32, %c0_i32_0 : i32, i32
  }
  func.func @transform_6(%arg0: i32) -> (i32, i32) {
    %c0_i32 = arith.constant 0 : i32
    %c0_i32_0 = arith.constant 0 : i32
    return %arg0, %c0_i32 : i32, i32
  }
  func.func @transform_7(%arg0: i32) -> (i32, i32, i32) {
    %c0_i32 = arith.constant 0 : i32
    %c0_i32_0 = arith.constant 0 : i32
    %c0_i32_1 = arith.constant 0 : i32
    return %arg0, %c0_i32, %c0_i32_0 : i32, i32, i32
  }
  func.func @transform_8(%arg0: i32) -> (i32, i32, i32) {
    %c0_i32 = arith.constant 0 : i32
    %c0_i32_0 = arith.constant 0 : i32
    %c0_i32_1 = arith.constant 0 : i32
    return %arg0, %c0_i32, %c0_i32_0 : i32, i32, i32
  }
}

</mosaic_0001>

<llo_original>
// kernel: tile.28
$region0: #{tile.28}
  #allocation0 [shape = 's32[1]{0}', space=sflag, size = 0x4, scoped, tag = 'scoped memory for tile.28']
  %s0 = inlined_call_operand.vmem [shape: f32[8], index: 0, kind: input, shape index: {}]
  %s1 = inlined_call_operand.vmem [shape: f32[32,8], index: 1, kind: output, shape index: {}]
  // Predicated region
  $region2: #{tile.28} parent=0 // pred_check
    _
  $region3: #{tile.28} parent=0 // pred_check_branch
    %3 = sbr.rel (0) target = $region5
  $region4: #{tile.28} parent=0 // pred_region
    _
  $region5: #{tile.28} parent=0 // pred_fallthru
    _
  %v4 = vld [vmem:[%s0] ss:$0 sm:$0xff]
  %5 = vst [vmem:[%s1] sm:$0xff] %v4
  %s6 = scalar_lea.vmem %s1, 8
  %7 = vst [vmem:[%s6] sm:$0xff] %v4
  %s8 = scalar_lea.vmem %s1, 16
  %9 = vst [vmem:[%s8] sm:$0xff] %v4
  %s10 = scalar_lea.vmem %s1, 24
  %11 = vst [vmem:[%s10] sm:$0xff] %v4

// kernel: tile.29
$region0: #{tile.29}
  %s0 = inlined_call_operand.vmem [shape: f32[32,8], index: 0, kind: input, shape index: {}]
  %s1 = inlined_call_operand.vmem [shape: f32[1,256], index: 1, kind: output, shape index: {}]
  $region1: #{tile.29} parent=0
    #allocation0 [shape = 'u8[8192]{0}', space=vmem, size = 0x2000, scoped, tag = 'scoped mem for output reshape']
    %s2 = smov 3
    %v3 = vld [vmem:[%s0] ss:$16 sm:%s2]
    %vm4 = vcmask 64512
    %5 = vst.msk [vmem:[#allocation0] ss:$8 sm:$0x3] %vm4, %v3
    %s6 = scalar_lea.vmem %s0, 15
    %s7 = smov 3
    %v8 = vld [vmem:[%s6] ss:$16 sm:%s7]
    %9 = vrot.lane.b32.xlu0 %v8, 120
    %v10 = vpop.permute.xlu0 %9
    %vm11 = vcmask 1048512
    %12 = vst.msk [vmem:[#allocation0] ss:$8 sm:$0x3] %vm11, %v10
    %s13 = scalar_lea.vmem %s0, 14
    %s14 = smov 3
    %v15 = vld [vmem:[%s13] ss:$16 sm:%s14]
    %16 = vrot.lane.b32.xlu0 %v15, 112
    %v17 = vpop.permute.xlu0 %16
    %vm18 = vcmask 982912
    %19 = vst.msk [vmem:[#allocation0] ss:$8 sm:$0x3] %vm18, %v17
    %s20 = scalar_lea.vmem %s0, 13
    %s21 = smov 3
    %v22 = vld [vmem:[%s20] ss:$16 sm:%s21]
    %23 = vrot.lane.b32.xlu0 %v22, 104
    %v24 = vpop.permute.xlu0 %23
    %vm25 = vcmask 917312
    %26 = vst.msk [vmem:[#allocation0] ss:$8 sm:$0x3] %vm25, %v24
    %s27 = scalar_lea.vmem %s0, 12
    %s28 = smov 3
    %v29 = vld [vmem:[%s27] ss:$16 sm:%s28]
    %30 = vrot.lane.b32.xlu0 %v29, 96
    %v31 = vpop.permute.xlu0 %30
    %vm32 = vcmask 851712
    %33 = vst.msk [vmem:[#allocation0] ss:$8 sm:$0x3] %vm32, %v31
    %s34 = scalar_lea.vmem %s0, 11
    %s35 = smov 3
    %v36 = vld [vmem:[%s34] ss:$16 sm:%s35]
    %37 = vrot.lane.b32.xlu0 %v36, 88
    %v38 = vpop.permute.xlu0 %37
    %vm39 = vcmask 786112
    %40 = vst.msk [vmem:[#allocation0] ss:$8 sm:$0x3] %vm39, %v38
    %s41 = scalar_lea.vmem %s0, 10
    %s42 = smov 3
    %v43 = vld [vmem:[%s41] ss:$16 sm:%s42]
    %44 = vrot.lane.b32.xlu0 %v43, 80
    %v45 = vpop.permute.xlu0 %44
    %vm46 = vcmask 720512
    %47 = vst.msk [vmem:[#allocation0] ss:$8 sm:$0x3] %vm46, %v45
    %s48 = scalar_lea.vmem %s0, 9
    %s49 = smov 3
    %v50 = vld [vmem:[%s48] ss:$16 sm:%s49]
    %51 = vrot.lane.b32.xlu0 %v50, 72
    %v52 = vpop.permute.xlu0 %51
    %vm53 = vcmask 654912
    %54 = vst.msk [vmem:[#allocation0] ss:$8 sm:$0x3] %vm53, %v52
    %s55 = scalar_lea.vmem %s0, 8
    %s56 = smov 3
    %v57 = vld [vmem:[%s55] ss:$16 sm:%s56]
    %58 = vrot.lane.b32.xlu0 %v57, 64
    %v59 = vpop.permute.xlu0 %58
    %vm60 = vcmask 589312
    %61 = vst.msk [vmem:[#allocation0] ss:$8 sm:$0x3] %vm60, %v59
    %s62 = scalar_lea.vmem %s0, 7
    %s63 = smov 3
    %v64 = vld [vmem:[%s62] ss:$16 sm:%s63]
    %65 = vrot.lane.b32.xlu0 %v64, 56
    %v66 = vpop.permute.xlu0 %65
    %vm67 = vcmask 523712
    %68 = vst.msk [vmem:[#allocation0] ss:$8 sm:$0x3] %vm67, %v66
    %s69 = scalar_lea.vmem %s0, 6
    %s70 = smov 3
    %v71 = vld [vmem:[%s69] ss:$16 sm:%s70]
    %72 = vrot.lane.b32.xlu0 %v71, 48
    %v73 = vpop.permute.xlu0 %72
    %vm74 = vcmask 458112
    %75 = vst.msk [vmem:[#allocation0] ss:$8 sm:$0x3] %vm74, %v73
    %s76 = scalar_lea.vmem %s0, 5
    %s77 = smov 3
    %v78 = vld [vmem:[%s76] ss:$16 sm:%s77]
    %79 = vrot.lane.b32.xlu0 %v78, 40
    %v80 = vpop.permute.xlu0 %79
    %vm81 = vcmask 392512
    %82 = vst.msk [vmem:[#allocation0] ss:$8 sm:$0x3] %vm81, %v80
    %s83 = scalar_lea.vmem %s0, 4
    %s84 = smov 3
    %v85 = vld [vmem:[%s83] ss:$16 sm:%s84]
    %86 = vrot.lane.b32.xlu0 %v85, 32
    %v87 = vpop.permute.xlu0 %86
    %vm88 = vcmask 326912
    %89 = vst.msk [vmem:[#allocation0] ss:$8 sm:$0x3] %vm88, %v87
    %s90 = scalar_lea.vmem %s0, 3
    %s91 = smov 3
    %v92 = vld [vmem:[%s90] ss:$16 sm:%s91]
    %93 = vrot.lane.b32.xlu0 %v92, 24
    %v94 = vpop.permute.xlu0 %93
    %vm95 = vcmask 261312
    %96 = vst.msk [vmem:[#allocation0] ss:$8 sm:$0x3] %vm95, %v94
    %s97 = scalar_lea.vmem %s0, 2
    %s98 = smov 3
    %v99 = vld [vmem:[%s97] ss:$16 sm:%s98]
    %100 = vrot.lane.b32.xlu0 %v99, 16
    %v101 = vpop.permute.xlu0 %100
    %vm102 = vcmask 195712
    %103 = vst.msk [vmem:[#allocation0] ss:$8 sm:$0x3] %vm102, %v101
    %s104 = scalar_lea.vmem %s0, 1
    %s105 = smov 3
    %v106 = vld [vmem:[%s104] ss:$16 sm:%s105]
    %107 = vrot.lane.b32.xlu0 %v106, 8
    %v108 = vpop.permute.xlu0 %107
    %vm109 = vcmask 130112
    %110 = vst.msk [vmem:[#allocation0] ss:$8 sm:$0x3] %vm109, %v108
    %s112 = sshllo.u32 0, 1
    %v114 = vld [vmem:[#allocation0] sm:%s112]
    %s115 = sshllo.u32 0, 1
    %116 = vst [vmem:[%s1] sm:%s115] %v114
    %s117 = scalar_lea.vmem [#allocation0], 8
    %v118 = vld [vmem:[%s117] sm:%s112]
    %s119 = sshllo.u32 0, 1
    %s120 = scalar_lea.vmem %s1, 1
    %121 = vst [vmem:[%s120] sm:%s119] %v118

// kernel: tile.23
$region0: #{tile.23}
  #allocation0 [shape = 's32[1]{0}', space=sflag, size = 0x4, scoped, tag = 'scoped memory for tile.23']
  %s0 = inlined_call_operand.vmem [shape: f32[2], index: 0, kind: input, shape index: {}]
  %s1 = inlined_call_operand.vmem [shape: f32[32,2], index: 1, kind: output, shape index: {}]
  // Predicated region
  $region2: #{tile.23} parent=0 // pred_check
    _
  $region3: #{tile.23} parent=0 // pred_check_branch
    %3 = sbr.rel (0) target = $region5
  $region4: #{tile.23} parent=0 // pred_region
    _
  $region5: #{tile.23} parent=0 // pred_fallthru
    _
  %v4 = vld [vmem:[%s0] ss:$0 sm:$0xff]
  %5 = vst [vmem:[%s1] sm:$0xff] %v4
  %s6 = scalar_lea.vmem %s1, 8
  %7 = vst [vmem:[%s6] sm:$0xff] %v4
  %s8 = scalar_lea.vmem %s1, 16
  %9 = vst [vmem:[%s8] sm:$0xff] %v4
  %s10 = scalar_lea.vmem %s1, 24
  %11 = vst [vmem:[%s10] sm:$0xff] %v4

// kernel: tile.24
$region0: #{tile.24}
  %s0 = inlined_call_operand.vmem [shape: f32[32,2], index: 0, kind: input, shape index: {}]
  %s1 = inlined_call_operand.vmem [shape: f32[1,64], index: 1, kind: output, shape index: {}]
  $region1: #{tile.24} parent=0
    #allocation0 [shape = 'u8[4096]{0}', space=vmem, size = 0x1000, scoped, tag = 'scoped mem for output reshape']
    %v2 = vld [vmem:[%s0] sm:$0x1]
    %vm3 = vcmask 15360
    %4 = vst.msk [vmem:[#allocation0] sm:$0x1] %vm3, %v2
    %s5 = scalar_lea.vmem %s0, 31
    %v6 = vld [vmem:[%s5] sm:$0x1]
    %7 = vrot.lane.b32.xlu0 %v6, 62
    %v8 = vpop.permute.xlu0 %7
    %vm9 = vcmask 523760
    %10 = vst.msk [vmem:[#allocation0] sm:$0x1] %vm9, %v8
    %s11 = scalar_lea.vmem %s0, 30
    %v12 = vld [vmem:[%s11] sm:$0x1]
    %13 = vrot.lane.b32.xlu0 %v12, 60
    %v14 = vpop.permute.xlu0 %13
    %vm15 = vcmask 507360
    %16 = vst.msk [vmem:[#allocation0] sm:$0x1] %vm15, %v14
    %s17 = scalar_lea.vmem %s0, 29
    %v18 = vld [vmem:[%s17] sm:$0x1]
    %19 = vrot.lane.b32.xlu0 %v18, 58
    %v20 = vpop.permute.xlu0 %19
    %vm21 = vcmask 490960
    %22 = vst.msk [vmem:[#allocation0] sm:$0x1] %vm21, %v20
    %s23 = scalar_lea.vmem %s0, 28
    %v24 = vld [vmem:[%s23] sm:$0x1]
    %25 = vrot.lane.b32.xlu0 %v24, 56
    %v26 = vpop.permute.xlu0 %25
    %vm27 = vcmask 474560
    %28 = vst.msk [vmem:[#allocation0] sm:$0x1] %vm27, %v26
    %s29 = scalar_lea.vmem %s0, 27
    %v30 = vld [vmem:[%s29] sm:$0x1]
    %31 = vrot.lane.b32.xlu0 %v30, 54
    %v32 = vpop.permute.xlu0 %31
    %vm33 = vcmask 458160
    %34 = vst.msk [vmem:[#allocation0] sm:$0x1] %vm33, %v32
    %s35 = scalar_lea.vmem %s0, 26
    %v36 = vld [vmem:[%s35] sm:$0x1]
    %37 = vrot.lane.b32.xlu0 %v36, 52
    %v38 = vpop.permute.xlu0 %37
    %vm39 = vcmask 441760
    %40 = vst.msk [vmem:[#allocation0] sm:$0x1] %vm39, %v38
    %s41 = scalar_lea.vmem %s0, 25
    %v42 = vld [vmem:[%s41] sm:$0x1]
    %43 = vrot.lane.b32.xlu0 %v42, 50
    %v44 = vpop.permute.xlu0 %43
    %vm45 = vcmask 425360
    %46 = vst.msk [vmem:[#allocation0] sm:$0x1] %vm45, %v44
    %s47 = scalar_lea.vmem %s0, 24
    %v48 = vld [vmem:[%s47] sm:$0x1]
    %49 = vrot.lane.b32.xlu0 %v48, 48
    %v50 = vpop.permute.xlu0 %49
    %vm51 = vcmask 408960
    %52 = vst.msk [vmem:[#allocation0] sm:$0x1] %vm51, %v50
    %s53 = scalar_lea.vmem %s0, 23
    %v54 = vld [vmem:[%s53] sm:$0x1]
    %55 = vrot.lane.b32.xlu0 %v54, 46
    %v56 = vpop.permute.xlu0 %55
    %vm57 = vcmask 392560
    %58 = vst.msk [vmem:[#allocation0] sm:$0x1] %vm57, %v56
    %s59 = scalar_lea.vmem %s0, 22
    %v60 = vld [vmem:[%s59] sm:$0x1]
    %61 = vrot.lane.b32.xlu0 %v60, 44
    %v62 = vpop.permute.xlu0 %61
    %vm63 = vcmask 376160
    %64 = vst.msk [vmem:[#allocation0] sm:$0x1] %vm63, %v62
    %s65 = scalar_lea.vmem %s0, 21
    %v66 = vld [vmem:[%s65] sm:$0x1]
    %67 = vrot.lane.b32.xlu0 %v66, 42
    %v68 = vpop.permute.xlu0 %67
    %vm69 = vcmask 359760
    %70 = vst.msk [vmem:[#allocation0] sm:$0x1] %vm69, %v68
    %s71 = scalar_lea.vmem %s0, 20
    %v72 = vld [vmem:[%s71] sm:$0x1]
    %73 = vrot.lane.b32.xlu0 %v72, 40
    %v74 = vpop.permute.xlu0 %73
    %vm75 = vcmask 343360
    %76 = vst.msk [vmem:[#allocation0] sm:$0x1] %vm75, %v74
    %s77 = scalar_lea.vmem %s0, 19
    %v78 = vld [vmem:[%s77] sm:$0x1]
    %79 = vrot.lane.b32.xlu0 %v78, 38
    %v80 = vpop.permute.xlu0 %79
    %vm81 = vcmask 326960
    %82 = vst.msk [vmem:[#allocation0] sm:$0x1] %vm81, %v80
    %s83 = scalar_lea.vmem %s0, 18
    %v84 = vld [vmem:[%s83] sm:$0x1]
    %85 = vrot.lane.b32.xlu0 %v84, 36
    %v86 = vpop.permute.xlu0 %85
    %vm87 = vcmask 310560
    %88 = vst.msk [vmem:[#allocation0] sm:$0x1] %vm87, %v86
    %s89 = scalar_lea.vmem %s0, 17
    %v90 = vld [vmem:[%s89] sm:$0x1]
    %91 = vrot.lane.b32.xlu0 %v90, 34
    %v92 = vpop.permute.xlu0 %91
    %vm93 = vcmask 294160
    %94 = vst.msk [vmem:[#allocation0] sm:$0x1] %vm93, %v92
    %s95 = scalar_lea.vmem %s0, 16
    %v96 = vld [vmem:[%s95] sm:$0x1]
    %97 = vrot.lane.b32.xlu0 %v96, 32
    %v98 = vpop.permute.xlu0 %97
    %vm99 = vcmask 277760
    %100 = vst.msk [vmem:[#allocation0] sm:$0x1] %vm99, %v98
    %s101 = scalar_lea.vmem %s0, 15
    %v102 = vld [vmem:[%s101] sm:$0x1]
    %103 = vrot.lane.b32.xlu0 %v102, 30
    %v104 = vpop.permute.xlu0 %103
    %vm105 = vcmask 261360
    %106 = vst.msk [vmem:[#allocation0] sm:$0x1] %vm105, %v104
    %s107 = scalar_lea.vmem %s0, 14
    %v108 = vld [vmem:[%s107] sm:$0x1]
    %109 = vrot.lane.b32.xlu0 %v108, 28
    %v110 = vpop.permute.xlu0 %109
    %vm111 = vcmask 244960
    %112 = vst.msk [vmem:[#allocation0] sm:$0x1] %vm111, %v110
    %s113 = scalar_lea.vmem %s0, 13
    %v114 = vld [vmem:[%s113] sm:$0x1]
    %115 = vrot.lane.b32.xlu0 %v114, 26
    %v116 = vpop.permute.xlu0 %115
    %vm117 = vcmask 228560
    %118 = vst.msk [vmem:[#allocation0] sm:$0x1] %vm117, %v116
    %s119 = scalar_lea.vmem %s0, 12
    %v120 = vld [vmem:[%s119] sm:$0x1]
    %121 = vrot.lane.b32.xlu0 %v120, 24
    %v122 = vpop.permute.xlu0 %121
    %vm123 = vcmask 212160
    %124 = vst.msk [vmem:[#allocation0] sm:$0x1] %vm123, %v122
    %s125 = scalar_lea.vmem %s0, 11
    %v126 = vld [vmem:[%s125] sm:$0x1]
    %127 = vrot.lane.b32.xlu0 %v126, 22
    %v128 = vpop.permute.xlu0 %127
    %vm129 = vcmask 195760
    %130 = vst.msk [vmem:[#allocation0] sm:$0x1] %vm129, %v128
    %s131 = scalar_lea.vmem %s0, 10
    %v132 = vld [vmem:[%s131] sm:$0x1]
    %133 = vrot.lane.b32.xlu0 %v132, 20
    %v134 = vpop.permute.xlu0 %133
    %vm135 = vcmask 179360
    %136 = vst.msk [vmem:[#allocation0] sm:$0x1] %vm135, %v134
    %s137 = scalar_lea.vmem %s0, 9
    %v138 = vld [vmem:[%s137] sm:$0x1]
    %139 = vrot.lane.b32.xlu0 %v138, 18
    %v140 = vpop.permute.xlu0 %139
    %vm141 = vcmask 162960
    %142 = vst.msk [vmem:[#allocation0] sm:$0x1] %vm141, %v140
    %s143 = scalar_lea.vmem %s0, 8
    %v144 = vld [vmem:[%s143] sm:$0x1]
    %145 = vrot.lane.b32.xlu0 %v144, 16
    %v146 = vpop.permute.xlu0 %145
    %vm147 = vcmask 146560
    %148 = vst.msk [vmem:[#allocation0] sm:$0x1] %vm147, %v146
    %s149 = scalar_lea.vmem %s0, 7
    %v150 = vld [vmem:[%s149] sm:$0x1]
    %151 = vrot.lane.b32.xlu0 %v150, 14
    %v152 = vpop.permute.xlu0 %151
    %vm153 = vcmask 130160
    %154 = vst.msk [vmem:[#allocation0] sm:$0x1] %vm153, %v152
    %s155 = scalar_lea.vmem %s0, 6
    %v156 = vld [vmem:[%s155] sm:$0x1]
    %157 = vrot.lane.b32.xlu0 %v156, 12
    %v158 = vpop.permute.xlu0 %157
    %vm159 = vcmask 113760
    %160 = vst.msk [vmem:[#allocation0] sm:$0x1] %vm159, %v158
    %s161 = scalar_lea.vmem %s0, 5
    %v162 = vld [vmem:[%s161] sm:$0x1]
    %163 = vrot.lane.b32.xlu0 %v162, 10
    %v164 = vpop.permute.xlu0 %163
    %vm165 = vcmask 97360
    %166 = vst.msk [vmem:[#allocation0] sm:$0x1] %vm165, %v164
    %s167 = scalar_lea.vmem %s0, 4
    %v168 = vld [vmem:[%s167] sm:$0x1]
    %169 = vrot.lane.b32.xlu0 %v168, 8
    %v170 = vpop.permute.xlu0 %169
    %vm171 = vcmask 80960
    %172 = vst.msk [vmem:[#allocation0] sm:$0x1] %vm171, %v170
    %s173 = scalar_lea.vmem %s0, 3
    %v174 = vld [vmem:[%s173] sm:$0x1]
    %175 = vrot.lane.b32.xlu0 %v174, 6
    %v176 = vpop.permute.xlu0 %175
    %vm177 = vcmask 64560
    %178 = vst.msk [vmem:[#allocation0] sm:$0x1] %vm177, %v176
    %s179 = scalar_lea.vmem %s0, 2
    %v180 = vld [vmem:[%s179] sm:$0x1]
    %181 = vrot.lane.b32.xlu0 %v180, 4
    %v182 = vpop.permute.xlu0 %181
    %vm183 = vcmask 48160
    %184 = vst.msk [vmem:[#allocation0] sm:$0x1] %vm183, %v182
    %s185 = scalar_lea.vmem %s0, 1
    %v186 = vld [vmem:[%s185] sm:$0x1]
    %187 = vrot.lane.b32.xlu0 %v186, 2
    %v188 = vpop.permute.xlu0 %187
    %vm189 = vcmask 31760
    %190 = vst.msk [vmem:[#allocation0] sm:$0x1] %vm189, %v188
    %s192 = sshllo.u32 0, 1
    %v194 = vld [vmem:[#allocation0] sm:%s192]
    %s195 = sshllo.u32 0, 1
    %196 = vst [vmem:[%s1] sm:%s195] %v194

// kernel: double_upconv_unet_forward.1
$region0: #{double_upconv_unet_forward.1}
  #allocation0 [shape = 'u32[]', space=smem, size = 0x4, offset = 0x4, fixed_abs, tag = 'smem constant byte address 0x4 - core index']
  #allocation1 [shape = 'u32[144,128]{1,0:T(1,128)}', space=vmem, size = 0x12000, scoped, tag = 'internal scratch']
  %s0 = inlined_call_operand.vmem [shape: f32[32,64], index: 0, kind: input, shape index: {}]
  %s1 = inlined_call_operand.vmem [shape: f32[3,64,32], index: 1, kind: input, shape index: {}]
  %s2 = inlined_call_operand.vmem [shape: f32[3,64,64], index: 2, kind: input, shape index: {}]
  %s3 = inlined_call_operand.vmem [shape: f32[3,64,256], index: 3, kind: input, shape index: {}]
  %s4 = inlined_call_operand.vmem [shape: f32[1,64], index: 4, kind: input, shape index: {}]
  %s5 = inlined_call_operand.vmem [shape: f32[1,256], index: 5, kind: input, shape index: {}]
  %s6 = inlined_call_operand.vmem [shape: bf16[64,256], index: 6, kind: output, shape index: {0}]
  %s7 = inlined_call_operand.vmem [shape: f32[1,1,256], index: 7, kind: output, shape index: {1}]
  %s8 = inlined_call_operand.vmem [shape: f32[1,1,256], index: 8, kind: output, shape index: {2}]
  %9 = xla_tuple %s6, %s7, %s8
  %s10 = sld [smem:[#allocation0]]
  $region50: #{double_upconv_unet_forward.1} parent=0
    _
  %s12 = ssub.s32 1, %s10
  %s13 = scalar_select 0, %s12, %s10
  // Predicated region
  $region2: #{double_upconv_unet_forward.1} parent=0 // pred_check
    _
  $region3: #{double_upconv_unet_forward.1} parent=0 // pred_check_branch
    %15 = sbr.rel (0) target = $region5
  $region4: #{double_upconv_unet_forward.1} parent=0 // pred_region
    _
  $region5: #{double_upconv_unet_forward.1} parent=0 // pred_fallthru
    _
  // Predicated region
  $region6: #{double_upconv_unet_forward.1} parent=0 // pred_check
    _
  $region7: #{double_upconv_unet_forward.1} parent=0 // pred_check_branch
    %17 = sbr.rel (0) target = $region9
  $region8: #{double_upconv_unet_forward.1} parent=0 // pred_region
    _
  $region9: #{double_upconv_unet_forward.1} parent=0 // pred_fallthru
    _
  // Predicated region
  $region10: #{double_upconv_unet_forward.1} parent=0 // pred_check
    _
  $region11: #{double_upconv_unet_forward.1} parent=0 // pred_check_branch
    %19 = sbr.rel (0) target = $region13
  $region12: #{double_upconv_unet_forward.1} parent=0 // pred_region
    _
  $region13: #{double_upconv_unet_forward.1} parent=0 // pred_fallthru
    _
  // Predicated region
  $region14: #{double_upconv_unet_forward.1} parent=0 // pred_check
    _
  $region15: #{double_upconv_unet_forward.1} parent=0 // pred_check_branch
    %21 = sbr.rel (0) target = $region17
  $region16: #{double_upconv_unet_forward.1} parent=0 // pred_region
    _
  $region17: #{double_upconv_unet_forward.1} parent=0 // pred_fallthru
    _
  // Predicated region
  $region18: #{double_upconv_unet_forward.1} parent=0 // pred_check
    _
  $region19: #{double_upconv_unet_forward.1} parent=0 // pred_check_branch
    %23 = sbr.rel (0) target = $region21
  $region20: #{double_upconv_unet_forward.1} parent=0 // pred_region
    _
  $region21: #{double_upconv_unet_forward.1} parent=0 // pred_fallthru
    _
  // Predicated region
  $region22: #{double_upconv_unet_forward.1} parent=0 // pred_check
    _
  $region23: #{double_upconv_unet_forward.1} parent=0 // pred_check_branch
    %25 = sbr.rel (0) target = $region25
  $region24: #{double_upconv_unet_forward.1} parent=0 // pred_region
    _
  $region25: #{double_upconv_unet_forward.1} parent=0 // pred_fallthru
    _
  %v26 = vld [vmem:[%s0] sm:$0xff]
  %v27 = vld [vmem:[%s0 + $0x8] sm:$0xff]
  %v28 = vld [vmem:[%s0 + $0x10] sm:$0xff]
  %v29 = vld [vmem:[%s0 + $0x18] sm:$0xff]
  %v30 = vld [vmem:[%s2] sm:$0xff]
  %v31 = vld [vmem:[%s2 + $0x8] sm:$0xff]
  %v32 = vld [vmem:[%s2 + $0x10] sm:$0xff]
  %v33 = vld [vmem:[%s2 + $0x18] sm:$0xff]
  %v34 = vld [vmem:[%s2 + $0x20] sm:$0xff]
  %v35 = vld [vmem:[%s2 + $0x28] sm:$0xff]
  %v36 = vld [vmem:[%s2 + $0x30] sm:$0xff]
  %v37 = vld [vmem:[%s2 + $0x38] sm:$0xff]
  %vm38 = vcmask 523264
  %v40 = vsel %vm38, %v26, 0
  %v43 = vsel %vm38, %v27, 0
  %v46 = vsel %vm38, %v28, 0
  %v49 = vsel %vm38, %v29, 0
  %51 = vmatprep.subr.mxu0 0.0
  %52 = vmatpush1.msra.mxu0 %v30
  %53 = vmatprep.subr.mxu0 0.0
  %54 = vmatpush1.msra.mxu0 %v31
  %55 = vmatprep.subr.mxu0 0.0
  %56 = vmatpush1.msra.mxu0 %v32
  %57 = vmatprep.subr.mxu0 0.0
  %58 = vmatpush1.msra.mxu0 %v33
  %59 = vmatprep.subr.mxu0 0.0
  %60 = vmatpush1.msra.mxu0 %v34
  %61 = vmatprep.subr.mxu0 0.0
  %62 = vmatpush1.msra.mxu0 %v35
  %63 = vmatprep.subr.mxu0 0.0
  %64 = vmatpush1.msra.mxu0 %v36
  %65 = vmatprep.subr.mxu0 0.0
  %66 = vmatpush1.msra.mxu0 %v37
  %67 = vmatprep.subr.mxu0 0.0
  %68 = vmatpush1.msra.mxu0 0.0
  %69 = vmatprep.subr.mxu0 0.0
  %70 = vmatpush1.msra.mxu0 0.0
  %71 = vmatprep.subr.mxu0 0.0
  %72 = vmatpush1.msra.mxu0 0.0
  %73 = vmatprep.subr.mxu0 0.0
  %74 = vmatpush1.msra.mxu0 0.0
  %75 = vmatprep.subr.mxu0 0.0
  %76 = vmatpush1.msra.mxu0 0.0
  %77 = vmatprep.subr.mxu0 0.0
  %78 = vmatpush1.msra.mxu0 0.0
  %79 = vmatprep.subr.mxu0 0.0
  %80 = vmatpush1.msra.mxu0 0.0
  %81 = vmatprep.subr.mxu0 0.0
  %82 = vmatpush1.msra.mxu0 0.0
  %83 = vmatprep.subr.mxu0 0.0
  %84 = vmatpush1.msra.mxu0 0.0
  %85 = vmatprep.subr.mxu0 0.0
  %86 = vmatpush1.msra.mxu0 0.0
  %87 = vmatprep.subr.mxu0 0.0
  %88 = vmatpush1.msra.mxu0 0.0
  %89 = vmatprep.subr.mxu0 0.0
  %90 = vmatpush1.msra.mxu0 0.0
  %91 = vmatprep.subr.mxu0 0.0
  %92 = vmatpush1.msra.mxu0 0.0
  %93 = vmatprep.subr.mxu0 0.0
  %94 = vmatpush1.msra.mxu0 0.0
  %95 = vmatprep.subr.mxu0 0.0
  %96 = vmatpush1.msra.mxu0 0.0
  %97 = vmatprep.subr.mxu0 0.0
  %98 = vmatpush1.msra.mxu0 0.0
  %99 = vmatprep.subr.mxu0 0.0
  %100 = vmatpush1.msra.mxu0 0.0
  %101 = vmatprep.subr.mxu0 0.0
  %102 = vmatpush1.msra.mxu0 0.0
  %103 = vmatprep.subr.mxu0 0.0
  %104 = vmatpush1.msra.mxu0 0.0
  %105 = vmatprep.subr.mxu0 0.0
  %106 = vmatpush1.msra.mxu0 0.0
  %107 = vmatprep.subr.mxu0 0.0
  %108 = vmatpush1.msra.mxu0 0.0
  %109 = vmatprep.subr.mxu0 0.0
  %110 = vmatpush1.msra.mxu0 0.0
  %111 = vmatprep.subr.mxu0 0.0
  %112 = vmatpush1.msra.mxu0 0.0
  %113 = vmatprep.subr.mxu0 0.0
  %114 = vmatpush1.msra.mxu0 0.0
  %115 = vmatprep.mubr.f32.mxu0 0.0
  %116 = vmatmul.mubr.f32.gmra.mrb[0].mxu0 %v40
  %v117 = vpop.f32.mrb[0].mxu0
  %v118 = vadd.f32 0.0, %v117
  %v119 = vpop.f32.mrb[0].mxu0
  %120 = vmatprep.mubr.f32.mxu0 0.0
  %121 = vmatmul.mubr.f32.gmra.mrb[0].mxu0 %v43
  %v122 = vpop.f32.mrb[0].mxu0
  %v123 = vadd.f32 0.0, %v122
  %v124 = vpop.f32.mrb[0].mxu0
  %125 = vmatprep.mubr.f32.mxu0 0.0
  %126 = vmatmul.mubr.f32.gmra.mrb[0].mxu0 %v46
  %v127 = vpop.f32.mrb[0].mxu0
  %v128 = vadd.f32 0.0, %v127
  %v129 = vpop.f32.mrb[0].mxu0
  %130 = vmatprep.mubr.f32.mxu0 0.0
  %131 = vmatmul.mubr.f32.gmra.mrb[0].mxu0 %v49
  %v132 = vpop.f32.mrb[0].mxu0
  %v133 = vadd.f32 0.0, %v132
  %v134 = vpop.f32.mrb[0].mxu0
  %135 = vdwg.mxu0
  %v136 = vld [vmem:[%s1] sm:$0xff]
  %v137 = vld [vmem:[%s1 + $0x8] sm:$0xff]
  %v138 = vld [vmem:[%s1 + $0x10] sm:$0xff]
  %v139 = vld [vmem:[%s1 + $0x18] sm:$0xff]
  %v140 = vld [vmem:[%s1 + $0x20] sm:$0xff]
  %v141 = vld [vmem:[%s1 + $0x28] sm:$0xff]
  %v142 = vld [vmem:[%s1 + $0x30] sm:$0xff]
  %v143 = vld [vmem:[%s1 + $0x38] sm:$0xff]
  %s144 = scalar_lea.vmem %s2, 64
  %v145 = vld [vmem:[%s144] sm:$0xff]
  %v146 = vld [vmem:[%s144 + $0x8] sm:$0xff]
  %v147 = vld [vmem:[%s144 + $0x10] sm:$0xff]
  %v148 = vld [vmem:[%s144 + $0x18] sm:$0xff]
  %v149 = vld [vmem:[%s144 + $0x20] sm:$0xff]
  %v150 = vld [vmem:[%s144 + $0x28] sm:$0xff]
  %v151 = vld [vmem:[%s144 + $0x30] sm:$0xff]
  %v152 = vld [vmem:[%s144 + $0x38] sm:$0xff]
  %153 = vmatprep.subr.mxu0 0.0
  %154 = vmatpush1.msra.mxu0 %v145
  %155 = vmatprep.subr.mxu0 0.0
  %156 = vmatpush1.msra.mxu0 %v146
  %157 = vmatprep.subr.mxu0 0.0
  %158 = vmatpush1.msra.mxu0 %v147
  %159 = vmatprep.subr.mxu0 0.0
  %160 = vmatpush1.msra.mxu0 %v148
  %161 = vmatprep.subr.mxu0 0.0
  %162 = vmatpush1.msra.mxu0 %v149
  %163 = vmatprep.subr.mxu0 0.0
  %164 = vmatpush1.msra.mxu0 %v150
  %165 = vmatprep.subr.mxu0 0.0
  %166 = vmatpush1.msra.mxu0 %v151
  %167 = vmatprep.subr.mxu0 0.0
  %168 = vmatpush1.msra.mxu0 %v152
  %169 = vmatprep.subr.mxu0 0.0
  %170 = vmatpush1.msra.mxu0 0.0
  %171 = vmatprep.subr.mxu0 0.0
  %172 = vmatpush1.msra.mxu0 0.0
  %173 = vmatprep.subr.mxu0 0.0
  %174 = vmatpush1.msra.mxu0 0.0
  %175 = vmatprep.subr.mxu0 0.0
  %176 = vmatpush1.msra.mxu0 0.0
  %177 = vmatprep.subr.mxu0 0.0
  %178 = vmatpush1.msra.mxu0 0.0
  %179 = vmatprep.subr.mxu0 0.0
  %180 = vmatpush1.msra.mxu0 0.0
  %181 = vmatprep.subr.mxu0 0.0
  %182 = vmatpush1.msra.mxu0 0.0
  %183 = vmatprep.subr.mxu0 0.0
  %184 = vmatpush1.msra.mxu0 0.0
  %185 = vmatprep.subr.mxu0 0.0
  %186 = vmatpush1.msra.mxu0 0.0
  %187 = vmatprep.subr.mxu0 0.0
  %188 = vmatpush1.msra.mxu0 0.0
  %189 = vmatprep.subr.mxu0 0.0
  %190 = vmatpush1.msra.mxu0 0.0
  %191 = vmatprep.subr.mxu0 0.0
  %192 = vmatpush1.msra.mxu0 0.0
  %193 = vmatprep.subr.mxu0 0.0
  %194 = vmatpush1.msra.mxu0 0.0
  %195 = vmatprep.subr.mxu0 0.0
  %196 = vmatpush1.msra.mxu0 0.0
  %197 = vmatprep.subr.mxu0 0.0
  %198 = vmatpush1.msra.mxu0 0.0
  %199 = vmatprep.subr.mxu0 0.0
  %200 = vmatpush1.msra.mxu0 0.0
  %201 = vmatprep.subr.mxu0 0.0
  %202 = vmatpush1.msra.mxu0 0.0
  %203 = vmatprep.subr.mxu0 0.0
  %204 = vmatpush1.msra.mxu0 0.0
  %205 = vmatprep.subr.mxu0 0.0
  %206 = vmatpush1.msra.mxu0 0.0
  %207 = vmatprep.subr.mxu0 0.0
  %208 = vmatpush1.msra.mxu0 0.0
  %209 = vmatprep.subr.mxu0 0.0
  %210 = vmatpush1.msra.mxu0 0.0
  %211 = vmatprep.subr.mxu0 0.0
  %212 = vmatpush1.msra.mxu0 0.0
  %213 = vmatprep.subr.mxu0 0.0
  %214 = vmatpush1.msra.mxu0 0.0
  %215 = vmatprep.subr.mxu0 0.0
  %216 = vmatpush1.msra.mxu0 0.0
  %217 = vmatprep.mubr.f32.mxu0 0.0
  %218 = vmatmul.mubr.f32.gmra.mrb[0].mxu0 %v40
  %v219 = vpop.f32.mrb[0].mxu0
  %v220 = vadd.f32 0.0, %v219
  %v221 = vpop.f32.mrb[0].mxu0
  %222 = vmatprep.mubr.f32.mxu0 0.0
  %223 = vmatmul.mubr.f32.gmra.mrb[0].mxu0 %v43
  %v224 = vpop.f32.mrb[0].mxu0
  %v225 = vadd.f32 0.0, %v224
  %v226 = vpop.f32.mrb[0].mxu0
  %227 = vmatprep.mubr.f32.mxu0 0.0
  %228 = vmatmul.mubr.f32.gmra.mrb[0].mxu0 %v46
  %v229 = vpop.f32.mrb[0].mxu0
  %v230 = vadd.f32 0.0, %v229
  %v231 = vpop.f32.mrb[0].mxu0
  %232 = vmatprep.mubr.f32.mxu0 0.0
  %233 = vmatmul.mubr.f32.gmra.mrb[0].mxu0 %v49
  %v234 = vpop.f32.mrb[0].mxu0
  %v235 = vadd.f32 0.0, %v234
  %v236 = vpop.f32.mrb[0].mxu0
  %237 = vdwg.mxu0
  %s238 = scalar_lea.vmem %s1, 64
  %v239 = vld [vmem:[%s238] sm:$0xff]
  %v240 = vld [vmem:[%s238 + $0x8] sm:$0xff]
  %v241 = vld [vmem:[%s238 + $0x10] sm:$0xff]
  %v242 = vld [vmem:[%s238 + $0x18] sm:$0xff]
  %v243 = vld [vmem:[%s238 + $0x20] sm:$0xff]
  %v244 = vld [vmem:[%s238 + $0x28] sm:$0xff]
  %v245 = vld [vmem:[%s238 + $0x30] sm:$0xff]
  %v246 = vld [vmem:[%s238 + $0x38] sm:$0xff]
  %vm247 = vcmask 261120
  %v249 = vsel %vm247, %v239, 0
  %v252 = vsel %vm247, %v240, 0
  %v255 = vsel %vm247, %v241, 0
  %v258 = vsel %vm247, %v242, 0
  %v261 = vsel %vm247, %v243, 0
  %v264 = vsel %vm247, %v244, 0
  %v267 = vsel %vm247, %v245, 0
  %v270 = vsel %vm247, %v246, 0
  %272 = vmatprep.subr.mxu0 0.0
  %273 = vmatpush1.msra.mxu0 %v220
  %274 = vmatprep.subr.mxu0 0.0
  %275 = vmatpush1.msra.mxu0 %v225
  %276 = vmatprep.subr.mxu0 0.0
  %277 = vmatpush1.msra.mxu0 %v230
  %278 = vmatprep.subr.mxu0 0.0
  %279 = vmatpush1.msra.mxu0 %v235
  %280 = vmatprep.subr.mxu0 0.0
  %281 = vmatpush1.msra.mxu0 0.0
  %282 = vmatprep.subr.mxu0 0.0
  %283 = vmatpush1.msra.mxu0 0.0
  %284 = vmatprep.subr.mxu0 0.0
  %285 = vmatpush1.msra.mxu0 0.0
  %286 = vmatprep.subr.mxu0 0.0
  %287 = vmatpush1.msra.mxu0 0.0
  %288 = vmatprep.subr.mxu0 0.0
  %289 = vmatpush1.msra.mxu0 0.0
  %290 = vmatprep.subr.mxu0 0.0
  %291 = vmatpush1.msra.mxu0 0.0
  %292 = vmatprep.subr.mxu0 0.0
  %293 = vmatpush1.msra.mxu0 0.0
  %294 = vmatprep.subr.mxu0 0.0
  %295 = vmatpush1.msra.mxu0 0.0
  %296 = vmatprep.subr.mxu0 0.0
  %297 = vmatpush1.msra.mxu0 0.0
  %298 = vmatprep.subr.mxu0 0.0
  %299 = vmatpush1.msra.mxu0 0.0
  %300 = vmatprep.subr.mxu0 0.0
  %301 = vmatpush1.msra.mxu0 0.0
  %302 = vmatprep.subr.mxu0 0.0
  %303 = vmatpush1.msra.mxu0 0.0
  %304 = vmatprep.subr.mxu0 0.0
  %305 = vmatpush1.msra.mxu0 0.0
  %306 = vmatprep.subr.mxu0 0.0
  %307 = vmatpush1.msra.mxu0 0.0
  %308 = vmatprep.subr.mxu0 0.0
  %309 = vmatpush1.msra.mxu0 0.0
  %310 = vmatprep.subr.mxu0 0.0
  %311 = vmatpush1.msra.mxu0 0.0
  %312 = vmatprep.subr.mxu0 0.0
  %313 = vmatpush1.msra.mxu0 0.0
  %314 = vmatprep.subr.mxu0 0.0
  %315 = vmatpush1.msra.mxu0 0.0
  %316 = vmatprep.subr.mxu0 0.0
  %317 = vmatpush1.msra.mxu0 0.0
  %318 = vmatprep.subr.mxu0 0.0
  %319 = vmatpush1.msra.mxu0 0.0
  %320 = vmatprep.subr.mxu0 0.0
  %321 = vmatpush1.msra.mxu0 0.0
  %322 = vmatprep.subr.mxu0 0.0
  %323 = vmatpush1.msra.mxu0 0.0
  %324 = vmatprep.subr.mxu0 0.0
  %325 = vmatpush1.msra.mxu0 0.0
  %326 = vmatprep.subr.mxu0 0.0
  %327 = vmatpush1.msra.mxu0 0.0
  %328 = vmatprep.subr.mxu0 0.0
  %329 = vmatpush1.msra.mxu0 0.0
  %330 = vmatprep.subr.mxu0 0.0
  %331 = vmatpush1.msra.mxu0 0.0
  %332 = vmatprep.subr.mxu0 0.0
  %333 = vmatpush1.msra.mxu0 0.0
  %334 = vmatprep.subr.mxu0 0.0
  %335 = vmatpush1.msra.mxu0 0.0
  %336 = vmatprep.mubr.f32.mxu0 0.0
  %337 = vmatmul.mubr.f32.gmra.mrb[0].mxu0 %v249
  %v338 = vpop.f32.mrb[0].mxu0
  %v339 = vadd.f32 0.0, %v338
  %v340 = vpop.f32.mrb[0].mxu0
  %341 = vmatprep.mubr.f32.mxu0 0.0
  %342 = vmatmul.mubr.f32.gmra.mrb[0].mxu0 %v252
  %v343 = vpop.f32.mrb[0].mxu0
  %v344 = vadd.f32 0.0, %v343
  %v345 = vpop.f32.mrb[0].mxu0
  %346 = vmatprep.mubr.f32.mxu0 0.0
  %347 = vmatmul.mubr.f32.gmra.mrb[0].mxu0 %v255
  %v348 = vpop.f32.mrb[0].mxu0
  %v349 = vadd.f32 0.0, %v348
  %v350 = vpop.f32.mrb[0].mxu0
  %351 = vmatprep.mubr.f32.mxu0 0.0
  %352 = vmatmul.mubr.f32.gmra.mrb[0].mxu0 %v258
  %v353 = vpop.f32.mrb[0].mxu0
  %v354 = vadd.f32 0.0, %v353
  %v355 = vpop.f32.mrb[0].mxu0
  %356 = vmatprep.mubr.f32.mxu0 0.0
  %357 = vmatmul.mubr.f32.gmra.mrb[0].mxu0 %v261
  %v358 = vpop.f32.mrb[0].mxu0
  %v359 = vadd.f32 0.0, %v358
  %v360 = vpop.f32.mrb[0].mxu0
  %361 = vmatprep.mubr.f32.mxu0 0.0
  %362 = vmatmul.mubr.f32.gmra.mrb[0].mxu0 %v264
  %v363 = vpop.f32.mrb[0].mxu0
  %v364 = vadd.f32 0.0, %v363
  %v365 = vpop.f32.mrb[0].mxu0
  %366 = vmatprep.mubr.f32.mxu0 0.0
  %367 = vmatmul.mubr.f32.gmra.mrb[0].mxu0 %v267
  %v368 = vpop.f32.mrb[0].mxu0
  %v369 = vadd.f32 0.0, %v368
  %v370 = vpop.f32.mrb[0].mxu0
  %371 = vmatprep.mubr.f32.mxu0 0.0
  %372 = vmatmul.mubr.f32.gmra.mrb[0].mxu0 %v270
  %v373 = vpop.f32.mrb[0].mxu0
  %v374 = vadd.f32 0.0, %v373
  %v375 = vpop.f32.mrb[0].mxu0
  %376 = vdwg.mxu0
  %v378 = vsel %vm247, %v136, 0
  %v381 = vsel %vm247, %v137, 0
  %v384 = vsel %vm247, %v138, 0
  %v387 = vsel %vm247, %v139, 0
  %v390 = vsel %vm247, %v140, 0
  %v393 = vsel %vm247, %v141, 0
  %v396 = vsel %vm247, %v142, 0
  %v399 = vsel %vm247, %v143, 0
  %401 = vmatprep.subr.mxu0 0.0
  %402 = vmatpush1.msra.mxu0 %v118
  %403 = vmatprep.subr.mxu0 0.0
  %404 = vmatpush1.msra.mxu0 %v123
  %405 = vmatprep.subr.mxu0 0.0
  %406 = vmatpush1.msra.mxu0 %v128
  %407 = vmatprep.subr.mxu0 0.0
  %408 = vmatpush1.msra.mxu0 %v133
  %409 = vmatprep.subr.mxu0 0.0
  %410 = vmatpush1.msra.mxu0 0.0
  %411 = vmatprep.subr.mxu0 0.0
  %412 = vmatpush1.msra.mxu0 0.0
  %413 = vmatprep.subr.mxu0 0.0
  %414 = vmatpush1.msra.mxu0 0.0
  %415 = vmatprep.subr.mxu0 0.0
  %416 = vmatpush1.msra.mxu0 0.0
  %417 = vmatprep.subr.mxu0 0.0
  %418 = vmatpush1.msra.mxu0 0.0
  %419 = vmatprep.subr.mxu0 0.0
  %420 = vmatpush1.msra.mxu0 0.0
  %421 = vmatprep.subr.mxu0 0.0
  %422 = vmatpush1.msra.mxu0 0.0
  %423 = vmatprep.subr.mxu0 0.0
  %424 = vmatpush1.msra.mxu0 0.0
  %425 = vmatprep.subr.mxu0 0.0
  %426 = vmatpush1.msra.mxu0 0.0
  %427 = vmatprep.subr.mxu0 0.0
  %428 = vmatpush1.msra.mxu0 0.0
  %429 = vmatprep.subr.mxu0 0.0
  %430 = vmatpush1.msra.mxu0 0.0
  %431 = vmatprep.subr.mxu0 0.0
  %432 = vmatpush1.msra.mxu0 0.0
  %433 = vmatprep.subr.mxu0 0.0
  %434 = vmatpush1.msra.mxu0 0.0
  %435 = vmatprep.subr.mxu0 0.0
  %436 = vmatpush1.msra.mxu0 0.0
  %437 = vmatprep.subr.mxu0 0.0
  %438 = vmatpush1.msra.mxu0 0.0
  %439 = vmatprep.subr.mxu0 0.0
  %440 = vmatpush1.msra.mxu0 0.0
  %441 = vmatprep.subr.mxu0 0.0
  %442 = vmatpush1.msra.mxu0 0.0
  %443 = vmatprep.subr.mxu0 0.0
  %444 = vmatpush1.msra.mxu0 0.0
  %445 = vmatprep.subr.mxu0 0.0
  %446 = vmatpush1.msra.mxu0 0.0
  %447 = vmatprep.subr.mxu0 0.0
  %448 = vmatpush1.msra.mxu0 0.0
  %449 = vmatprep.subr.mxu0 0.0
  %450 = vmatpush1.msra.mxu0 0.0
  %451 = vmatprep.subr.mxu0 0.0
  %452 = vmatpush1.msra.mxu0 0.0
  %453 = vmatprep.subr.mxu0 0.0
  %454 = vmatpush1.msra.mxu0 0.0
  %455 = vmatprep.subr.mxu0 0.0
  %456 = vmatpush1.msra.mxu0 0.0
  %457 = vmatprep.subr.mxu0 0.0
  %458 = vmatpush1.msra.mxu0 0.0
  %459 = vmatprep.subr.mxu0 0.0
  %460 = vmatpush1.msra.mxu0 0.0
  %461 = vmatprep.subr.mxu0 0.0
  %462 = vmatpush1.msra.mxu0 0.0
  %463 = vmatprep.subr.mxu0 0.0
  %464 = vmatpush1.msra.mxu0 0.0
  %465 = vmatprep.mubr.f32.mxu0 0.0
  %466 = vmatmul.mubr.f32.gmra.mrb[0].mxu0 %v378
  %v467 = vpop.f32.mrb[0].mxu0
  %v468 = vadd.f32 %v339, %v467
  %v469 = vpop.f32.mrb[0].mxu0
  %470 = vmatprep.mubr.f32.mxu0 0.0
  %471 = vmatmul.mubr.f32.gmra.mrb[0].mxu0 %v381
  %v472 = vpop.f32.mrb[0].mxu0
  %v473 = vadd.f32 %v344, %v472
  %v474 = vpop.f32.mrb[0].mxu0
  %475 = vmatprep.mubr.f32.mxu0 0.0
  %476 = vmatmul.mubr.f32.gmra.mrb[0].mxu0 %v384
  %v477 = vpop.f32.mrb[0].mxu0
  %v478 = vadd.f32 %v349, %v477
  %v479 = vpop.f32.mrb[0].mxu0
  %480 = vmatprep.mubr.f32.mxu0 0.0
  %481 = vmatmul.mubr.f32.gmra.mrb[0].mxu0 %v387
  %v482 = vpop.f32.mrb[0].mxu0
  %v483 = vadd.f32 %v354, %v482
  %v484 = vpop.f32.mrb[0].mxu0
  %485 = vmatprep.mubr.f32.mxu0 0.0
  %486 = vmatmul.mubr.f32.gmra.mrb[0].mxu0 %v390
  %v487 = vpop.f32.mrb[0].mxu0
  %v488 = vadd.f32 %v359, %v487
  %v489 = vpop.f32.mrb[0].mxu0
  %490 = vmatprep.mubr.f32.mxu0 0.0
  %491 = vmatmul.mubr.f32.gmra.mrb[0].mxu0 %v393
  %v492 = vpop.f32.mrb[0].mxu0
  %v493 = vadd.f32 %v364, %v492
  %v494 = vpop.f32.mrb[0].mxu0
  %495 = vmatprep.mubr.f32.mxu0 0.0
  %496 = vmatmul.mubr.f32.gmra.mrb[0].mxu0 %v396
  %v497 = vpop.f32.mrb[0].mxu0
  %v498 = vadd.f32 %v369, %v497
  %v499 = vpop.f32.mrb[0].mxu0
  %500 = vmatprep.mubr.f32.mxu0 0.0
  %501 = vmatmul.mubr.f32.gmra.mrb[0].mxu0 %v399
  %v502 = vpop.f32.mrb[0].mxu0
  %v503 = vadd.f32 %v374, %v502
  %v504 = vpop.f32.mrb[0].mxu0
  %505 = vdwg.mxu0
  %s506 = scalar_lea.vmem %s2, 128
  %v507 = vld [vmem:[%s506] sm:$0xff]
  %v508 = vld [vmem:[%s506 + $0x8] sm:$0xff]
  %v509 = vld [vmem:[%s506 + $0x10] sm:$0xff]
  %v510 = vld [vmem:[%s506 + $0x18] sm:$0xff]
  %v511 = vld [vmem:[%s506 + $0x20] sm:$0xff]
  %v512 = vld [vmem:[%s506 + $0x28] sm:$0xff]
  %v513 = vld [vmem:[%s506 + $0x30] sm:$0xff]
  %v514 = vld [vmem:[%s506 + $0x38] sm:$0xff]
  %515 = vmatprep.subr.mxu0 0.0
  %516 = vmatpush1.msra.mxu0 %v507
  %517 = vmatprep.subr.mxu0 0.0
  %518 = vmatpush1.msra.mxu0 %v508
  %519 = vmatprep.subr.mxu0 0.0
  %520 = vmatpush1.msra.mxu0 %v509
  %521 = vmatprep.subr.mxu0 0.0
  %522 = vmatpush1.msra.mxu0 %v510
  %523 = vmatprep.subr.mxu0 0.0
  %524 = vmatpush1.msra.mxu0 %v511
  %525 = vmatprep.subr.mxu0 0.0
  %526 = vmatpush1.msra.mxu0 %v512
  %527 = vmatprep.subr.mxu0 0.0
  %528 = vmatpush1.msra.mxu0 %v513
  %529 = vmatprep.subr.mxu0 0.0
  %530 = vmatpush1.msra.mxu0 %v514
  %531 = vmatprep.subr.mxu0 0.0
  %532 = vmatpush1.msra.mxu0 0.0
  %533 = vmatprep.subr.mxu0 0.0
  %534 = vmatpush1.msra.mxu0 0.0
  %535 = vmatprep.subr.mxu0 0.0
  %536 = vmatpush1.msra.mxu0 0.0
  %537 = vmatprep.subr.mxu0 0.0
  %538 = vmatpush1.msra.mxu0 0.0
  %539 = vmatprep.subr.mxu0 0.0
  %540 = vmatpush1.msra.mxu0 0.0
  %541 = vmatprep.subr.mxu0 0.0
  %542 = vmatpush1.msra.mxu0 0.0
  %543 = vmatprep.subr.mxu0 0.0
  %544 = vmatpush1.msra.mxu0 0.0
  %545 = vmatprep.subr.mxu0 0.0
  %546 = vmatpush1.msra.mxu0 0.0
  %547 = vmatprep.subr.mxu0 0.0
  %548 = vmatpush1.msra.mxu0 0.0
  %549 = vmatprep.subr.mxu0 0.0
  %550 = vmatpush1.msra.mxu0 0.0
  %551 = vmatprep.subr.mxu0 0.0
  %552 = vmatpush1.msra.mxu0 0.0
  %553 = vmatprep.subr.mxu0 0.0
  %554 = vmatpush1.msra.mxu0 0.0
  %555 = vmatprep.subr.mxu0 0.0
  %556 = vmatpush1.msra.mxu0 0.0
  %557 = vmatprep.subr.mxu0 0.0
  %558 = vmatpush1.msra.mxu0 0.0
  %559 = vmatprep.subr.mxu0 0.0
  %560 = vmatpush1.msra.mxu0 0.0
  %561 = vmatprep.subr.mxu0 0.0
  %562 = vmatpush1.msra.mxu0 0.0
  %563 = vmatprep.subr.mxu0 0.0
  %564 = vmatpush1.msra.mxu0 0.0
  %565 = vmatprep.subr.mxu0 0.0
  %566 = vmatpush1.msra.mxu0 0.0
  %567 = vmatprep.subr.mxu0 0.0
  %568 = vmatpush1.msra.mxu0 0.0
  %569 = vmatprep.subr.mxu0 0.0
  %570 = vmatpush1.msra.mxu0 0.0
  %571 = vmatprep.subr.mxu0 0.0
  %572 = vmatpush1.msra.mxu0 0.0
  %573 = vmatprep.subr.mxu0 0.0
  %574 = vmatpush1.msra.mxu0 0.0
  %575 = vmatprep.subr.mxu0 0.0
  %576 = vmatpush1.msra.mxu0 0.0
  %577 = vmatprep.subr.mxu0 0.0
  %578 = vmatpush1.msra.mxu0 0.0
  %579 = vmatprep.mubr.f32.mxu0 0.0
  %580 = vmatmul.mubr.f32.gmra.mrb[0].mxu0 %v40
  %v581 = vpop.f32.mrb[0].mxu0
  %v582 = vadd.f32 0.0, %v581
  %v583 = vpop.f32.mrb[0].mxu0
  %584 = vmatprep.mubr.f32.mxu0 0.0
  %585 = vmatmul.mubr.f32.gmra.mrb[0].mxu0 %v43
  %v586 = vpop.f32.mrb[0].mxu0
  %v587 = vadd.f32 0.0, %v586
  %v588 = vpop.f32.mrb[0].mxu0
  %589 = vmatprep.mubr.f32.mxu0 0.0
  %590 = vmatmul.mubr.f32.gmra.mrb[0].mxu0 %v46
  %v591 = vpop.f32.mrb[0].mxu0
  %v592 = vadd.f32 0.0, %v591
  %v593 = vpop.f32.mrb[0].mxu0
  %594 = vmatprep.mubr.f32.mxu0 0.0
  %595 = vmatmul.mubr.f32.gmra.mrb[0].mxu0 %v49
  %v596 = vpop.f32.mrb[0].mxu0
  %v597 = vadd.f32 0.0, %v596
  %v598 = vpop.f32.mrb[0].mxu0
  %599 = vdwg.mxu0
  %s600 = scalar_lea.vmem %s1, 128
  %v601 = vld [vmem:[%s600] sm:$0xff]
  %v602 = vld [vmem:[%s600 + $0x8] sm:$0xff]
  %v603 = vld [vmem:[%s600 + $0x10] sm:$0xff]
  %v604 = vld [vmem:[%s600 + $0x18] sm:$0xff]
  %v605 = vld [vmem:[%s600 + $0x20] sm:$0xff]
  %v606 = vld [vmem:[%s600 + $0x28] sm:$0xff]
  %v607 = vld [vmem:[%s600 + $0x30] sm:$0xff]
  %v608 = vld [vmem:[%s600 + $0x38] sm:$0xff]
  %v610 = vsel %vm247, %v601, 0
  %v613 = vsel %vm247, %v602, 0
  %v616 = vsel %vm247, %v603, 0
  %v619 = vsel %vm247, %v604, 0
  %v622 = vsel %vm247, %v605, 0
  %v625 = vsel %vm247, %v606, 0
  %v628 = vsel %vm247, %v607, 0
  %v631 = vsel %vm247, %v608, 0
  %633 = vmatprep.subr.mxu0 0.0
  %634 = vmatpush1.msra.mxu0 %v582
  %635 = vmatprep.subr.mxu0 0.0
  %636 = vmatpush1.msra.mxu0 %v587
  %637 = vmatprep.subr.mxu0 0.0
  %638 = vmatpush1.msra.mxu0 %v592
  %639 = vmatprep.subr.mxu0 0.0
  %640 = vmatpush1.msra.mxu0 %v597
  %641 = vmatprep.subr.mxu0 0.0
  %642 = vmatpush1.msra.mxu0 0.0
  %643 = vmatprep.subr.mxu0 0.0
  %644 = vmatpush1.msra.mxu0 0.0
  %645 = vmatprep.subr.mxu0 0.0
  %646 = vmatpush1.msra.mxu0 0.0
  %647 = vmatprep.subr.mxu0 0.0
  %648 = vmatpush1.msra.mxu0 0.0
  %649 = vmatprep.subr.mxu0 0.0
  %650 = vmatpush1.msra.mxu0 0.0
  %651 = vmatprep.subr.mxu0 0.0
  %652 = vmatpush1.msra.mxu0 0.0
  %653 = vmatprep.subr.mxu0 0.0
  %654 = vmatpush1.msra.mxu0 0.0
  %655 = vmatprep.subr.mxu0 0.0
  %656 = vmatpush1.msra.mxu0 0.0
  %657 = vmatprep.subr.mxu0 0.0
  %658 = vmatpush1.msra.mxu0 0.0
  %659 = vmatprep.subr.mxu0 0.0
  %660 = vmatpush1.msra.mxu0 0.0
  %661 = vmatprep.subr.mxu0 0.0
  %662 = vmatpush1.msra.mxu0 0.0
  %663 = vmatprep.subr.mxu0 0.0
  %664 = vmatpush1.msra.mxu0 0.0
  %665 = vmatprep.subr.mxu0 0.0
  %666 = vmatpush1.msra.mxu0 0.0
  %667 = vmatprep.subr.mxu0 0.0
  %668 = vmatpush1.msra.mxu0 0.0
  %669 = vmatprep.subr.mxu0 0.0
  %670 = vmatpush1.msra.mxu0 0.0
  %671 = vmatprep.subr.mxu0 0.0
  %672 = vmatpush1.msra.mxu0 0.0
  %673 = vmatprep.subr.mxu0 0.0
  %674 = vmatpush1.msra.mxu0 0.0
  %675 = vmatprep.subr.mxu0 0.0
  %676 = vmatpush1.msra.mxu0 0.0
  %677 = vmatprep.subr.mxu0 0.0
  %678 = vmatpush1.msra.mxu0 0.0
  %679 = vmatprep.subr.mxu0 0.0
  %680 = vmatpush1.msra.mxu0 0.0
  %681 = vmatprep.subr.mxu0 0.0
  %682 = vmatpush1.msra.mxu0 0.0
  %683 = vmatprep.subr.mxu0 0.0
  %684 = vmatpush1.msra.mxu0 0.0
  %685 = vmatprep.subr.mxu0 0.0
  %686 = vmatpush1.msra.mxu0 0.0
  %687 = vmatprep.subr.mxu0 0.0
  %688 = vmatpush1.msra.mxu0 0.0
  %689 = vmatprep.subr.mxu0 0.0
  %690 = vmatpush1.msra.mxu0 0.0
  %691 = vmatprep.subr.mxu0 0.0
  %692 = vmatpush1.msra.mxu0 0.0
  %693 = vmatprep.subr.mxu0 0.0
  %694 = vmatpush1.msra.mxu0 0.0
  %695 = vmatprep.subr.mxu0 0.0
  %696 = vmatpush1.msra.mxu0 0.0
  %697 = vmatprep.mubr.f32.mxu0 0.0
  %698 = vmatmul.mubr.f32.gmra.mrb[0].mxu0 %v610
  %v699 = vpop.f32.mrb[0].mxu0
  %v700 = vadd.f32 0.0, %v699
  %v701 = vpop.f32.mrb[0].mxu0
  %702 = vmatprep.mubr.f32.mxu0 0.0
  %703 = vmatmul.mubr.f32.gmra.mrb[0].mxu0 %v613
  %v704 = vpop.f32.mrb[0].mxu0
  %v705 = vadd.f32 0.0, %v704
  %v706 = vpop.f32.mrb[0].mxu0
  %707 = vmatprep.mubr.f32.mxu0 0.0
  %708 = vmatmul.mubr.f32.gmra.mrb[0].mxu0 %v616
  %v709 = vpop.f32.mrb[0].mxu0
  %v710 = vadd.f32 0.0, %v709
  %v711 = vpop.f32.mrb[0].mxu0
  %712 = vmatprep.mubr.f32.mxu0 0.0
  %713 = vmatmul.mubr.f32.gmra.mrb[0].mxu0 %v619
  %v714 = vpop.f32.mrb[0].mxu0
  %v715 = vadd.f32 0.0, %v714
  %v716 = vpop.f32.mrb[0].mxu0
  %717 = vmatprep.mubr.f32.mxu0 0.0
  %718 = vmatmul.mubr.f32.gmra.mrb[0].mxu0 %v622
  %v719 = vpop.f32.mrb[0].mxu0
  %v720 = vadd.f32 0.0, %v719
  %v721 = vpop.f32.mrb[0].mxu0
  %722 = vmatprep.mubr.f32.mxu0 0.0
  %723 = vmatmul.mubr.f32.gmra.mrb[0].mxu0 %v625
  %v724 = vpop.f32.mrb[0].mxu0
  %v725 = vadd.f32 0.0, %v724
  %v726 = vpop.f32.mrb[0].mxu0
  %727 = vmatprep.mubr.f32.mxu0 0.0
  %728 = vmatmul.mubr.f32.gmra.mrb[0].mxu0 %v628
  %v729 = vpop.f32.mrb[0].mxu0
  %v730 = vadd.f32 0.0, %v729
  %v731 = vpop.f32.mrb[0].mxu0
  %732 = vmatprep.mubr.f32.mxu0 0.0
  %733 = vmatmul.mubr.f32.gmra.mrb[0].mxu0 %v631
  %v734 = vpop.f32.mrb[0].mxu0
  %v735 = vadd.f32 0.0, %v734
  %v736 = vpop.f32.mrb[0].mxu0
  %737 = vdwg.mxu0
  %v738 = vadd.f32 %v468, %v700
  %v739 = vadd.f32 %v473, %v705
  %v740 = vadd.f32 %v478, %v710
  %v741 = vadd.f32 %v483, %v715
  %v742 = vadd.f32 %v488, %v720
  %v743 = vadd.f32 %v493, %v725
  %v744 = vadd.f32 %v498, %v730
  %v745 = vadd.f32 %v503, %v735
  %v746 = vld [vmem:[%s4] sm:$0x1]
  %v748 = vlaneseq
  %v749 = vshrl.u32 %v748, 7
  %v750 = vsub.s32 0, %v749
  %v751 = vrot.slane %v746, %v750
  %v753 = vadd.f32 %v738, %v751
  %v754 = vadd.f32 %v739, %v751
  %v755 = vadd.f32 %v740, %v751
  %v756 = vadd.f32 %v741, %v751
  %v757 = vadd.f32 %v742, %v751
  %v758 = vadd.f32 %v743, %v751
  %v759 = vadd.f32 %v744, %v751
  %v760 = vadd.f32 %v745, %v751
  %v761 = vlaneseq
  %v762 = vshrl.u32 %v761, 7
  %v763 = vadd.s32 %v762, 8
  %v764 = vadd.s32 %v762, 16
  %v765 = vadd.s32 %v762, 24
  %v766 = vadd.s32 %v762, 32
  %v767 = vadd.s32 %v762, 40
  %v768 = vadd.s32 %v762, 48
  %v769 = vadd.s32 %v762, 56
  %vm770 = vcmp.lt.s32.totalorder %v762, 0
  %v771 = vsub.s32 0, %v762
  %v772 = vsel %vm770, %v771, %v762
  %v773 = vshrl.u32 %v772, 5
  %v774 = vand.u32 %v772, 31
  %v775 = vsub.s32 0, %v774
  %v776 = vsel %vm770, %v775, %v774
  %vm777 = vcmp.lt.s32.totalorder %v763, 0
  %v778 = vsub.s32 0, %v763
  %v779 = vsel %vm777, %v778, %v763
  %v780 = vshrl.u32 %v779, 5
  %v781 = vand.u32 %v779, 31
  %v782 = vsub.s32 0, %v781
  %v783 = vsel %vm777, %v782, %v781
  %vm784 = vcmp.lt.s32.totalorder %v764, 0
  %v785 = vsub.s32 0, %v764
  %v786 = vsel %vm784, %v785, %v764
  %v787 = vshrl.u32 %v786, 5
  %v788 = vand.u32 %v786, 31
  %v789 = vsub.s32 0, %v788
  %v790 = vsel %vm784, %v789, %v788
  %vm791 = vcmp.lt.s32.totalorder %v765, 0
  %v792 = vsub.s32 0, %v765
  %v793 = vsel %vm791, %v792, %v765
  %v794 = vshrl.u32 %v793, 5
  %v795 = vand.u32 %v793, 31
  %v796 = vsub.s32 0, %v795
  %v797 = vsel %vm791, %v796, %v795
  %vm798 = vcmp.lt.s32.totalorder %v766, 0
  %v799 = vsub.s32 0, %v766
  %v800 = vsel %vm798, %v799, %v766
  %v801 = vshrl.u32 %v800, 5
  %v802 = vand.u32 %v800, 31
  %v803 = vsub.s32 0, %v802
  %v804 = vsel %vm798, %v803, %v802
  %vm805 = vcmp.lt.s32.totalorder %v767, 0
  %v806 = vsub.s32 0, %v767
  %v807 = vsel %vm805, %v806, %v767
  %v808 = vshrl.u32 %v807, 5
  %v809 = vand.u32 %v807, 31
  %v810 = vsub.s32 0, %v809
  %v811 = vsel %vm805, %v810, %v809
  %vm812 = vcmp.lt.s32.totalorder %v768, 0
  %v813 = vsub.s32 0, %v768
  %v814 = vsel %vm812, %v813, %v768
  %v815 = vshrl.u32 %v814, 5
  %v816 = vand.u32 %v814, 31
  %v817 = vsub.s32 0, %v816
  %v818 = vsel %vm812, %v817, %v816
  %vm819 = vcmp.lt.s32.totalorder %v769, 0
  %v820 = vsub.s32 0, %v769
  %v821 = vsel %vm819, %v820, %v769
  %v822 = vshrl.u32 %v821, 5
  %v823 = vand.u32 %v821, 31
  %v824 = vsub.s32 0, %v823
  %v825 = vsel %vm819, %v824, %v823
  %vm826 = vcmp.ne.s32.totalorder %v776, 0
  %vm827 = vcmp.ne.s32.totalorder %v783, 0
  %vm828 = vcmp.ne.s32.totalorder %v790, 0
  %vm829 = vcmp.ne.s32.totalorder %v797, 0
  %vm830 = vcmp.ne.s32.totalorder %v804, 0
  %vm831 = vcmp.ne.s32.totalorder %v811, 0
  %vm832 = vcmp.ne.s32.totalorder %v818, 0
  %vm833 = vcmp.ne.s32.totalorder %v825, 0
  %vm834 = vcmp.lt.s32.totalorder %v776, 0
  %vm835 = vcmp.lt.s32.totalorder %v783, 0
  %vm836 = vcmp.lt.s32.totalorder %v790, 0
  %vm837 = vcmp.lt.s32.totalorder %v797, 0
  %vm838 = vcmp.lt.s32.totalorder %v804, 0
  %vm839 = vcmp.lt.s32.totalorder %v811, 0
  %vm840 = vcmp.lt.s32.totalorder %v818, 0
  %vm841 = vcmp.lt.s32.totalorder %v825, 0
  %vm842 = vmand %vm834, %vm826
  %vm843 = vmand %vm835, %vm827
  %vm844 = vmand %vm836, %vm828
  %vm845 = vmand %vm837, %vm829
  %vm846 = vmand %vm838, %vm830
  %vm847 = vmand %vm839, %vm831
  %vm848 = vmand %vm840, %vm832
  %vm849 = vmand %vm841, %vm833
  %v850 = vadd.s32 %v776, 32
  %v851 = vadd.s32 %v783, 32
  %v852 = vadd.s32 %v790, 32
  %v853 = vadd.s32 %v797, 32
  %v854 = vadd.s32 %v804, 32
  %v855 = vadd.s32 %v811, 32
  %v856 = vadd.s32 %v818, 32
  %v857 = vadd.s32 %v825, 32
  %v858 = vsel %vm842, %v850, %v776
  %v859 = vsel %vm843, %v851, %v783
  %v860 = vsel %vm844, %v852, %v790
  %v861 = vsel %vm845, %v853, %v797
  %v862 = vsel %vm846, %v854, %v804
  %v863 = vsel %vm847, %v855, %v811
  %v864 = vsel %vm848, %v856, %v818
  %v865 = vsel %vm849, %v857, %v825
  %vm866 = vcmp.eq.s32.totalorder %v858, 0
  %vm867 = vcmp.eq.s32.totalorder %v859, 0
  %vm868 = vcmp.eq.s32.totalorder %v860, 0
  %vm869 = vcmp.eq.s32.totalorder %v861, 0
  %vm870 = vcmp.eq.s32.totalorder %v862, 0
  %vm871 = vcmp.eq.s32.totalorder %v863, 0
  %vm872 = vcmp.eq.s32.totalorder %v864, 0
  %vm873 = vcmp.eq.s32.totalorder %v865, 0
  %v874 = vrot.slane %v753, 7
  %v875 = vrot.slane %v754, 7
  %v876 = vrot.slane %v755, 7
  %v877 = vrot.slane %v756, 7
  %v878 = vrot.slane %v757, 7
  %v879 = vrot.slane %v758, 7
  %v880 = vrot.slane %v759, 7
  %v881 = vrot.slane %v760, 7
  %vm882 = vcmp.lt.s32.totalorder %v762, 1
  %v883 = vsel %vm882, %v880, %v881
  %v884 = vsel %vm882, %v879, %v880
  %v885 = vsel %vm882, %v878, %v879
  %v886 = vsel %vm882, %v877, %v878
  %v887 = vsel %vm882, %v876, %v877
  %v888 = vsel %vm882, %v875, %v876
  %v889 = vsel %vm882, %v874, %v875
  %v890 = vsel %vm882, %v881, %v874
  %v891 = vsel %vm866, 1, 0
  %v892 = vsel %vm867, 1, 0
  %v893 = vsel %vm868, 1, 0
  %v894 = vsel %vm869, 1, 0
  %v895 = vsel %vm870, 1, 0
  %v896 = vsel %vm871, 1, 0
  %v897 = vsel %vm872, 1, 0
  %v898 = vsel %vm873, 1, 0
  %vm899 = vcmp.eq.s32.totalorder %v891, 1
  %vm900 = vcmp.eq.s32.totalorder %v892, 1
  %vm901 = vcmp.eq.s32.totalorder %v893, 1
  %vm902 = vcmp.eq.s32.totalorder %v894, 1
  %vm903 = vcmp.eq.s32.totalorder %v895, 1
  %vm904 = vcmp.eq.s32.totalorder %v896, 1
  %vm905 = vcmp.eq.s32.totalorder %v897, 1
  %vm906 = vcmp.eq.s32.totalorder %v898, 1
  %v907 = vsel %vm899, 0.0, %v890
  %v908 = vsel %vm900, 0.0, %v889
  %v909 = vsel %vm901, 0.0, %v888
  %v910 = vsel %vm902, 0.0, %v887
  %v911 = vsel %vm903, 0.0, %v886
  %v912 = vsel %vm904, 0.0, %v885
  %v913 = vsel %vm905, 0.0, %v884
  %v914 = vsel %vm906, 0.0, %v883
  %vm915 = vcmp.eq.s32.totalorder %v858, 31
  %vm916 = vcmp.eq.s32.totalorder %v859, 31
  %vm917 = vcmp.eq.s32.totalorder %v860, 31
  %vm918 = vcmp.eq.s32.totalorder %v861, 31
  %vm919 = vcmp.eq.s32.totalorder %v862, 31
  %vm920 = vcmp.eq.s32.totalorder %v863, 31
  %vm921 = vcmp.eq.s32.totalorder %v864, 31
  %vm922 = vcmp.eq.s32.totalorder %v865, 31
  %v923 = vrot.slane %v753, 1
  %v924 = vrot.slane %v754, 1
  %v925 = vrot.slane %v755, 1
  %v926 = vrot.slane %v756, 1
  %v927 = vrot.slane %v757, 1
  %v928 = vrot.slane %v758, 1
  %v929 = vrot.slane %v759, 1
  %v930 = vrot.slane %v760, 1
  %vm931 = vcmp.lt.s32.totalorder %v762, 7
  %v932 = vsel %vm931, %v929, %v930
  %v933 = vsel %vm931, %v928, %v929
  %v934 = vsel %vm931, %v927, %v928
  %v935 = vsel %vm931, %v926, %v927
  %v936 = vsel %vm931, %v925, %v926
  %v937 = vsel %vm931, %v924, %v925
  %v938 = vsel %vm931, %v923, %v924
  %v939 = vsel %vm931, %v930, %v923
  %v940 = vsel %vm915, 1, 0
  %v941 = vsel %vm916, 1, 0
  %v942 = vsel %vm917, 1, 0
  %v943 = vsel %vm918, 1, 0
  %v944 = vsel %vm919, 1, 0
  %v945 = vsel %vm920, 1, 0
  %v946 = vsel %vm921, 1, 0
  %v947 = vsel %vm922, 1, 0
  %vm948 = vcmp.eq.s32.totalorder %v940, 1
  %vm949 = vcmp.eq.s32.totalorder %v941, 1
  %vm950 = vcmp.eq.s32.totalorder %v942, 1
  %vm951 = vcmp.eq.s32.totalorder %v943, 1
  %vm952 = vcmp.eq.s32.totalorder %v944, 1
  %vm953 = vcmp.eq.s32.totalorder %v945, 1
  %vm954 = vcmp.eq.s32.totalorder %v946, 1
  %vm955 = vcmp.eq.s32.totalorder %v947, 1
  %v956 = vsel %vm948, 0.0, %v938
  %v957 = vsel %vm949, 0.0, %v937
  %v958 = vsel %vm950, 0.0, %v936
  %v959 = vsel %vm951, 0.0, %v935
  %v960 = vsel %vm952, 0.0, %v934
  %v961 = vsel %vm953, 0.0, %v933
  %v962 = vsel %vm954, 0.0, %v932
  %v963 = vsel %vm955, 0.0, %v939
  %v964 = vld [vmem:[%s3] sm:$0xff]
  %v965 = vld [vmem:[%s3 + $0x8] sm:$0xff]
  %v966 = vld [vmem:[%s3 + $0x10] sm:$0xff]
  %v967 = vld [vmem:[%s3 + $0x18] sm:$0xff]
  %v968 = vld [vmem:[%s3 + $0x20] sm:$0xff]
  %v969 = vld [vmem:[%s3 + $0x28] sm:$0xff]
  %v970 = vld [vmem:[%s3 + $0x30] sm:$0xff]
  %v971 = vld [vmem:[%s3 + $0x38] sm:$0xff]
  %v972 = vld [vmem:[%s3 + $0x40] sm:$0xff]
  %v973 = vld [vmem:[%s3 + $0x48] sm:$0xff]
  %v974 = vld [vmem:[%s3 + $0x50] sm:$0xff]
  %v975 = vld [vmem:[%s3 + $0x58] sm:$0xff]
  %v976 = vld [vmem:[%s3 + $0x60] sm:$0xff]
  %v977 = vld [vmem:[%s3 + $0x68] sm:$0xff]
  %v978 = vld [vmem:[%s3 + $0x70] sm:$0xff]
  %v979 = vld [vmem:[%s3 + $0x78] sm:$0xff]
  %s980 = scalar_lea.vmem %s3, 128
  %v981 = vld [vmem:[%s980] sm:$0xff]
  %v982 = vld [vmem:[%s980 + $0x8] sm:$0xff]
  %v983 = vld [vmem:[%s980 + $0x10] sm:$0xff]
  %v984 = vld [vmem:[%s980 + $0x18] sm:$0xff]
  %v985 = vld [vmem:[%s980 + $0x20] sm:$0xff]
  %v986 = vld [vmem:[%s980 + $0x28] sm:$0xff]
  %v987 = vld [vmem:[%s980 + $0x30] sm:$0xff]
  %v988 = vld [vmem:[%s980 + $0x38] sm:$0xff]
  %v989 = vld [vmem:[%s980 + $0x40] sm:$0xff]
  %v990 = vld [vmem:[%s980 + $0x48] sm:$0xff]
  %v991 = vld [vmem:[%s980 + $0x50] sm:$0xff]
  %v992 = vld [vmem:[%s980 + $0x58] sm:$0xff]
  %v993 = vld [vmem:[%s980 + $0x60] sm:$0xff]
  %v994 = vld [vmem:[%s980 + $0x68] sm:$0xff]
  %v995 = vld [vmem:[%s980 + $0x70] sm:$0xff]
  %v996 = vld [vmem:[%s980 + $0x78] sm:$0xff]
  %v998 = vsel %vm38, %v753, 0
  %v1001 = vsel %vm38, %v754, 0
  %v1004 = vsel %vm38, %v755, 0
  %v1007 = vsel %vm38, %v756, 0
  %v1010 = vsel %vm38, %v757, 0
  %v1013 = vsel %vm38, %v758, 0
  %v1016 = vsel %vm38, %v759, 0
  %v1019 = vsel %vm38, %v760, 0
  %1021 = vmatprep.subr.mxu0 %v982
  %1022 = vmatpush1.msra.mxu0 %v981
  %1023 = vmatprep.subr.mxu0 %v984
  %1024 = vmatpush1.msra.mxu0 %v983
  %1025 = vmatprep.subr.mxu0 %v986
  %1026 = vmatpush1.msra.mxu0 %v985
  %1027 = vmatprep.subr.mxu0 %v988
  %1028 = vmatpush1.msra.mxu0 %v987
  %1029 = vmatprep.subr.mxu0 %v990
  %1030 = vmatpush1.msra.mxu0 %v989
  %1031 = vmatprep.subr.mxu0 %v992
  %1032 = vmatpush1.msra.mxu0 %v991
  %1033 = vmatprep.subr.mxu0 %v994
  %1034 = vmatpush1.msra.mxu0 %v993
  %1035 = vmatprep.subr.mxu0 %v996
  %1036 = vmatpush1.msra.mxu0 %v995
  %1037 = vmatprep.subr.mxu0 0.0
  %1038 = vmatpush1.msra.mxu0 0.0
  %1039 = vmatprep.subr.mxu0 0.0
  %1040 = vmatpush1.msra.mxu0 0.0
  %1041 = vmatprep.subr.mxu0 0.0
  %1042 = vmatpush1.msra.mxu0 0.0
  %1043 = vmatprep.subr.mxu0 0.0
  %1044 = vmatpush1.msra.mxu0 0.0
  %1045 = vmatprep.subr.mxu0 0.0
  %1046 = vmatpush1.msra.mxu0 0.0
  %1047 = vmatprep.subr.mxu0 0.0
  %1048 = vmatpush1.msra.mxu0 0.0
  %1049 = vmatprep.subr.mxu0 0.0
  %1050 = vmatpush1.msra.mxu0 0.0
  %1051 = vmatprep.subr.mxu0 0.0
  %1052 = vmatpush1.msra.mxu0 0.0
  %1053 = vmatprep.subr.mxu0 0.0
  %1054 = vmatpush1.msra.mxu0 0.0
  %1055 = vmatprep.subr.mxu0 0.0
  %1056 = vmatpush1.msra.mxu0 0.0
  %1057 = vmatprep.subr.mxu0 0.0
  %1058 = vmatpush1.msra.mxu0 0.0
  %1059 = vmatprep.subr.mxu0 0.0
  %1060 = vmatpush1.msra.mxu0 0.0
  %1061 = vmatprep.subr.mxu0 0.0
  %1062 = vmatpush1.msra.mxu0 0.0
  %1063 = vmatprep.subr.mxu0 0.0
  %1064 = vmatpush1.msra.mxu0 0.0
  %1065 = vmatprep.subr.mxu0 0.0
  %1066 = vmatpush1.msra.mxu0 0.0
  %1067 = vmatprep.subr.mxu0 0.0
  %1068 = vmatpush1.msra.mxu0 0.0
  %1069 = vmatprep.subr.mxu0 0.0
  %1070 = vmatpush1.msra.mxu0 0.0
  %1071 = vmatprep.subr.mxu0 0.0
  %1072 = vmatpush1.msra.mxu0 0.0
  %1073 = vmatprep.subr.mxu0 0.0
  %1074 = vmatpush1.msra.mxu0 0.0
  %1075 = vmatprep.subr.mxu0 0.0
  %1076 = vmatpush1.msra.mxu0 0.0
  %1077 = vmatprep.subr.mxu0 0.0
  %1078 = vmatpush1.msra.mxu0 0.0
  %1079 = vmatprep.subr.mxu0 0.0
  %1080 = vmatpush1.msra.mxu0 0.0
  %1081 = vmatprep.subr.mxu0 0.0
  %1082 = vmatpush1.msra.mxu0 0.0
  %1083 = vmatprep.subr.mxu0 0.0
  %1084 = vmatpush1.msra.mxu0 0.0
  %1085 = vmatprep.mubr.f32.mxu0 0.0
  %1086 = vmatmul.mubr.f32.gmra.mrb[0].mxu0 %v998
  %v1087 = vpop.f32.mrb[0].mxu0
  %v1088 = vadd.f32 0.0, %v1087
  %v1089 = vpop.f32.mrb[0].mxu0
  %v1090 = vadd.f32 0.0, %v1089
  %1091 = vmatprep.mubr.f32.mxu0 0.0
  %1092 = vmatmul.mubr.f32.gmra.mrb[0].mxu0 %v1001
  %v1093 = vpop.f32.mrb[0].mxu0
  %v1094 = vadd.f32 0.0, %v1093
  %v1095 = vpop.f32.mrb[0].mxu0
  %v1096 = vadd.f32 0.0, %v1095
  %1097 = vmatprep.mubr.f32.mxu0 0.0
  %1098 = vmatmul.mubr.f32.gmra.mrb[0].mxu0 %v1004
  %v1099 = vpop.f32.mrb[0].mxu0
  %v1100 = vadd.f32 0.0, %v1099
  %v1101 = vpop.f32.mrb[0].mxu0
  %v1102 = vadd.f32 0.0, %v1101
  %1103 = vmatprep.mubr.f32.mxu0 0.0
  %1104 = vmatmul.mubr.f32.gmra.mrb[0].mxu0 %v1007
  %v1105 = vpop.f32.mrb[0].mxu0
  %v1106 = vadd.f32 0.0, %v1105
  %v1107 = vpop.f32.mrb[0].mxu0
  %v1108 = vadd.f32 0.0, %v1107
  %1109 = vmatprep.mubr.f32.mxu0 0.0
  %1110 = vmatmul.mubr.f32.gmra.mrb[0].mxu0 %v1010
  %v1111 = vpop.f32.mrb[0].mxu0
  %v1112 = vadd.f32 0.0, %v1111
  %v1113 = vpop.f32.mrb[0].mxu0
  %v1114 = vadd.f32 0.0, %v1113
  %1115 = vmatprep.mubr.f32.mxu0 0.0
  %1116 = vmatmul.mubr.f32.gmra.mrb[0].mxu0 %v1013
  %v1117 = vpop.f32.mrb[0].mxu0
  %v1118 = vadd.f32 0.0, %v1117
  %v1119 = vpop.f32.mrb[0].mxu0
  %v1120 = vadd.f32 0.0, %v1119
  %1121 = vmatprep.mubr.f32.mxu0 0.0
  %1122 = vmatmul.mubr.f32.gmra.mrb[0].mxu0 %v1016
  %v1123 = vpop.f32.mrb[0].mxu0
  %v1124 = vadd.f32 0.0, %v1123
  %v1125 = vpop.f32.mrb[0].mxu0
  %v1126 = vadd.f32 0.0, %v1125
  %1127 = vmatprep.mubr.f32.mxu0 0.0
  %1128 = vmatmul.mubr.f32.gmra.mrb[0].mxu0 %v1019
  %v1129 = vpop.f32.mrb[0].mxu0
  %v1130 = vadd.f32 0.0, %v1129
  %v1131 = vpop.f32.mrb[0].mxu0
  %v1132 = vadd.f32 0.0, %v1131
  %1133 = vdwg.mxu0
  %v1135 = vsel %vm38, %v907, 0
  %v1138 = vsel %vm38, %v908, 0
  %v1141 = vsel %vm38, %v909, 0
  %v1144 = vsel %vm38, %v910, 0
  %v1147 = vsel %vm38, %v911, 0
  %v1150 = vsel %vm38, %v912, 0
  %v1153 = vsel %vm38, %v913, 0
  %v1156 = vsel %vm38, %v914, 0
  %1158 = vmatprep.subr.mxu0 %v965
  %1159 = vmatpush1.msra.mxu0 %v964
  %1160 = vmatprep.subr.mxu0 %v967
  %1161 = vmatpush1.msra.mxu0 %v966
  %1162 = vmatprep.subr.mxu0 %v969
  %1163 = vmatpush1.msra.mxu0 %v968
  %1164 = vmatprep.subr.mxu0 %v971
  %1165 = vmatpush1.msra.mxu0 %v970
  %1166 = vmatprep.subr.mxu0 %v973
  %1167 = vmatpush1.msra.mxu0 %v972
  %1168 = vmatprep.subr.mxu0 %v975
  %1169 = vmatpush1.msra.mxu0 %v974
  %1170 = vmatprep.subr.mxu0 %v977
  %1171 = vmatpush1.msra.mxu0 %v976
  %1172 = vmatprep.subr.mxu0 %v979
  %1173 = vmatpush1.msra.mxu0 %v978
  %1174 = vmatprep.subr.mxu0 0.0
  %1175 = vmatpush1.msra.mxu0 0.0
  %1176 = vmatprep.subr.mxu0 0.0
  %1177 = vmatpush1.msra.mxu0 0.0
  %1178 = vmatprep.subr.mxu0 0.0
  %1179 = vmatpush1.msra.mxu0 0.0
  %1180 = vmatprep.subr.mxu0 0.0
  %1181 = vmatpush1.msra.mxu0 0.0
  %1182 = vmatprep.subr.mxu0 0.0
  %1183 = vmatpush1.msra.mxu0 0.0
  %1184 = vmatprep.subr.mxu0 0.0
  %1185 = vmatpush1.msra.mxu0 0.0
  %1186 = vmatprep.subr.mxu0 0.0
  %1187 = vmatpush1.msra.mxu0 0.0
  %1188 = vmatprep.subr.mxu0 0.0
  %1189 = vmatpush1.msra.mxu0 0.0
  %1190 = vmatprep.subr.mxu0 0.0
  %1191 = vmatpush1.msra.mxu0 0.0
  %1192 = vmatprep.subr.mxu0 0.0
  %1193 = vmatpush1.msra.mxu0 0.0
  %1194 = vmatprep.subr.mxu0 0.0
  %1195 = vmatpush1.msra.mxu0 0.0
  %1196 = vmatprep.subr.mxu0 0.0
  %1197 = vmatpush1.msra.mxu0 0.0
  %1198 = vmatprep.subr.mxu0 0.0
  %1199 = vmatpush1.msra.mxu0 0.0
  %1200 = vmatprep.subr.mxu0 0.0
  %1201 = vmatpush1.msra.mxu0 0.0
  %1202 = vmatprep.subr.mxu0 0.0
  %1203 = vmatpush1.msra.mxu0 0.0
  %1204 = vmatprep.subr.mxu0 0.0
  %1205 = vmatpush1.msra.mxu0 0.0
  %1206 = vmatprep.subr.mxu0 0.0
  %1207 = vmatpush1.msra.mxu0 0.0
  %1208 = vmatprep.subr.mxu0 0.0
  %1209 = vmatpush1.msra.mxu0 0.0
  %1210 = vmatprep.subr.mxu0 0.0
  %1211 = vmatpush1.msra.mxu0 0.0
  %1212 = vmatprep.subr.mxu0 0.0
  %1213 = vmatpush1.msra.mxu0 0.0
  %1214 = vmatprep.subr.mxu0 0.0
  %1215 = vmatpush1.msra.mxu0 0.0
  %1216 = vmatprep.subr.mxu0 0.0
  %1217 = vmatpush1.msra.mxu0 0.0
  %1218 = vmatprep.subr.mxu0 0.0
  %1219 = vmatpush1.msra.mxu0 0.0
  %1220 = vmatprep.subr.mxu0 0.0
  %1221 = vmatpush1.msra.mxu0 0.0
  %1222 = vmatprep.mubr.f32.mxu0 0.0
  %1223 = vmatmul.mubr.f32.gmra.mrb[0].mxu0 %v1135
  %v1224 = vpop.f32.mrb[0].mxu0
  %v1225 = vadd.f32 %v1088, %v1224
  %v1226 = vpop.f32.mrb[0].mxu0
  %v1227 = vadd.f32 %v1090, %v1226
  %1228 = vmatprep.mubr.f32.mxu0 0.0
  %1229 = vmatmul.mubr.f32.gmra.mrb[0].mxu0 %v1138
  %v1230 = vpop.f32.mrb[0].mxu0
  %v1231 = vadd.f32 %v1094, %v1230
  %v1232 = vpop.f32.mrb[0].mxu0
  %v1233 = vadd.f32 %v1096, %v1232
  %1234 = vmatprep.mubr.f32.mxu0 0.0
  %1235 = vmatmul.mubr.f32.gmra.mrb[0].mxu0 %v1141
  %v1236 = vpop.f32.mrb[0].mxu0
  %v1237 = vadd.f32 %v1100, %v1236
  %v1238 = vpop.f32.mrb[0].mxu0
  %v1239 = vadd.f32 %v1102, %v1238
  %1240 = vmatprep.mubr.f32.mxu0 0.0
  %1241 = vmatmul.mubr.f32.gmra.mrb[0].mxu0 %v1144
  %v1242 = vpop.f32.mrb[0].mxu0
  %v1243 = vadd.f32 %v1106, %v1242
  %v1244 = vpop.f32.mrb[0].mxu0
  %v1245 = vadd.f32 %v1108, %v1244
  %1246 = vmatprep.mubr.f32.mxu0 0.0
  %1247 = vmatmul.mubr.f32.gmra.mrb[0].mxu0 %v1147
  %v1248 = vpop.f32.mrb[0].mxu0
  %v1249 = vadd.f32 %v1112, %v1248
  %v1250 = vpop.f32.mrb[0].mxu0
  %v1251 = vadd.f32 %v1114, %v1250
  %1252 = vmatprep.mubr.f32.mxu0 0.0
  %1253 = vmatmul.mubr.f32.gmra.mrb[0].mxu0 %v1150
  %v1254 = vpop.f32.mrb[0].mxu0
  %v1255 = vadd.f32 %v1118, %v1254
  %v1256 = vpop.f32.mrb[0].mxu0
  %v1257 = vadd.f32 %v1120, %v1256
  %1258 = vmatprep.mubr.f32.mxu0 0.0
  %1259 = vmatmul.mubr.f32.gmra.mrb[0].mxu0 %v1153
  %v1260 = vpop.f32.mrb[0].mxu0
  %v1261 = vadd.f32 %v1124, %v1260
  %v1262 = vpop.f32.mrb[0].mxu0
  %v1263 = vadd.f32 %v1126, %v1262
  %1264 = vmatprep.mubr.f32.mxu0 0.0
  %1265 = vmatmul.mubr.f32.gmra.mrb[0].mxu0 %v1156
  %v1266 = vpop.f32.mrb[0].mxu0
  %v1267 = vadd.f32 %v1130, %v1266
  %v1268 = vpop.f32.mrb[0].mxu0
  %v1269 = vadd.f32 %v1132, %v1268
  %1270 = vdwg.mxu0
  %s1271 = scalar_lea.vmem %s3, 256
  %v1272 = vld [vmem:[%s1271] sm:$0xff]
  %v1273 = vld [vmem:[%s1271 + $0x8] sm:$0xff]
  %v1274 = vld [vmem:[%s1271 + $0x10] sm:$0xff]
  %v1275 = vld [vmem:[%s1271 + $0x18] sm:$0xff]
  %v1276 = vld [vmem:[%s1271 + $0x20] sm:$0xff]
  %v1277 = vld [vmem:[%s1271 + $0x28] sm:$0xff]
  %v1278 = vld [vmem:[%s1271 + $0x30] sm:$0xff]
  %v1279 = vld [vmem:[%s1271 + $0x38] sm:$0xff]
  %v1280 = vld [vmem:[%s1271 + $0x40] sm:$0xff]
  %v1281 = vld [vmem:[%s1271 + $0x48] sm:$0xff]
  %v1282 = vld [vmem:[%s1271 + $0x50] sm:$0xff]
  %v1283 = vld [vmem:[%s1271 + $0x58] sm:$0xff]
  %v1284 = vld [vmem:[%s1271 + $0x60] sm:$0xff]
  %v1285 = vld [vmem:[%s1271 + $0x68] sm:$0xff]
  %v1286 = vld [vmem:[%s1271 + $0x70] sm:$0xff]
  %v1287 = vld [vmem:[%s1271 + $0x78] sm:$0xff]
  %v1289 = vsel %vm38, %v956, 0
  %v1292 = vsel %vm38, %v957, 0
  %v1295 = vsel %vm38, %v958, 0
  %v1298 = vsel %vm38, %v959, 0
  %v1301 = vsel %vm38, %v960, 0
  %v1304 = vsel %vm38, %v961, 0
  %v1307 = vsel %vm38, %v962, 0
  %v1310 = vsel %vm38, %v963, 0
  %1312 = vmatprep.subr.mxu0 %v1273
  %1313 = vmatpush1.msra.mxu0 %v1272
  %1314 = vmatprep.subr.mxu0 %v1275
  %1315 = vmatpush1.msra.mxu0 %v1274
  %1316 = vmatprep.subr.mxu0 %v1277
  %1317 = vmatpush1.msra.mxu0 %v1276
  %1318 = vmatprep.subr.mxu0 %v1279
  %1319 = vmatpush1.msra.mxu0 %v1278
  %1320 = vmatprep.subr.mxu0 %v1281
  %1321 = vmatpush1.msra.mxu0 %v1280
  %1322 = vmatprep.subr.mxu0 %v1283
  %1323 = vmatpush1.msra.mxu0 %v1282
  %1324 = vmatprep.subr.mxu0 %v1285
  %1325 = vmatpush1.msra.mxu0 %v1284
  %1326 = vmatprep.subr.mxu0 %v1287
  %1327 = vmatpush1.msra.mxu0 %v1286
  %1328 = vmatprep.subr.mxu0 0.0
  %1329 = vmatpush1.msra.mxu0 0.0
  %1330 = vmatprep.subr.mxu0 0.0
  %1331 = vmatpush1.msra.mxu0 0.0
  %1332 = vmatprep.subr.mxu0 0.0
  %1333 = vmatpush1.msra.mxu0 0.0
  %1334 = vmatprep.subr.mxu0 0.0
  %1335 = vmatpush1.msra.mxu0 0.0
  %1336 = vmatprep.subr.mxu0 0.0
  %1337 = vmatpush1.msra.mxu0 0.0
  %1338 = vmatprep.subr.mxu0 0.0
  %1339 = vmatpush1.msra.mxu0 0.0
  %1340 = vmatprep.subr.mxu0 0.0
  %1341 = vmatpush1.msra.mxu0 0.0
  %1342 = vmatprep.subr.mxu0 0.0
  %1343 = vmatpush1.msra.mxu0 0.0
  %1344 = vmatprep.subr.mxu0 0.0
  %1345 = vmatpush1.msra.mxu0 0.0
  %1346 = vmatprep.subr.mxu0 0.0
  %1347 = vmatpush1.msra.mxu0 0.0
  %1348 = vmatprep.subr.mxu0 0.0
  %1349 = vmatpush1.msra.mxu0 0.0
  %1350 = vmatprep.subr.mxu0 0.0
  %1351 = vmatpush1.msra.mxu0 0.0
  %1352 = vmatprep.subr.mxu0 0.0
  %1353 = vmatpush1.msra.mxu0 0.0
  %1354 = vmatprep.subr.mxu0 0.0
  %1355 = vmatpush1.msra.mxu0 0.0
  %1356 = vmatprep.subr.mxu0 0.0
  %1357 = vmatpush1.msra.mxu0 0.0
  %1358 = vmatprep.subr.mxu0 0.0
  %1359 = vmatpush1.msra.mxu0 0.0
  %1360 = vmatprep.subr.mxu0 0.0
  %1361 = vmatpush1.msra.mxu0 0.0
  %1362 = vmatprep.subr.mxu0 0.0
  %1363 = vmatpush1.msra.mxu0 0.0
  %1364 = vmatprep.subr.mxu0 0.0
  %1365 = vmatpush1.msra.mxu0 0.0
  %1366 = vmatprep.subr.mxu0 0.0
  %1367 = vmatpush1.msra.mxu0 0.0
  %1368 = vmatprep.subr.mxu0 0.0
  %1369 = vmatpush1.msra.mxu0 0.0
  %1370 = vmatprep.subr.mxu0 0.0
  %1371 = vmatpush1.msra.mxu0 0.0
  %1372 = vmatprep.subr.mxu0 0.0
  %1373 = vmatpush1.msra.mxu0 0.0
  %1374 = vmatprep.subr.mxu0 0.0
  %1375 = vmatpush1.msra.mxu0 0.0
  %1376 = vmatprep.mubr.f32.mxu0 0.0
  %1377 = vmatmul.mubr.f32.gmra.mrb[0].mxu0 %v1289
  %v1378 = vpop.f32.mrb[0].mxu0
  %v1379 = vadd.f32 0.0, %v1378
  %v1380 = vpop.f32.mrb[0].mxu0
  %v1381 = vadd.f32 0.0, %v1380
  %1382 = vmatprep.mubr.f32.mxu0 0.0
  %1383 = vmatmul.mubr.f32.gmra.mrb[0].mxu0 %v1292
  %v1384 = vpop.f32.mrb[0].mxu0
  %v1385 = vadd.f32 0.0, %v1384
  %v1386 = vpop.f32.mrb[0].mxu0
  %v1387 = vadd.f32 0.0, %v1386
  %1388 = vmatprep.mubr.f32.mxu0 0.0
  %1389 = vmatmul.mubr.f32.gmra.mrb[0].mxu0 %v1295
  %v1390 = vpop.f32.mrb[0].mxu0
  %v1391 = vadd.f32 0.0, %v1390
  %v1392 = vpop.f32.mrb[0].mxu0
  %v1393 = vadd.f32 0.0, %v1392
  %1394 = vmatprep.mubr.f32.mxu0 0.0
  %1395 = vmatmul.mubr.f32.gmra.mrb[0].mxu0 %v1298
  %v1396 = vpop.f32.mrb[0].mxu0
  %v1397 = vadd.f32 0.0, %v1396
  %v1398 = vpop.f32.mrb[0].mxu0
  %v1399 = vadd.f32 0.0, %v1398
  %1400 = vmatprep.mubr.f32.mxu0 0.0
  %1401 = vmatmul.mubr.f32.gmra.mrb[0].mxu0 %v1301
  %v1402 = vpop.f32.mrb[0].mxu0
  %v1403 = vadd.f32 0.0, %v1402
  %v1404 = vpop.f32.mrb[0].mxu0
  %v1405 = vadd.f32 0.0, %v1404
  %1406 = vmatprep.mubr.f32.mxu0 0.0
  %1407 = vmatmul.mubr.f32.gmra.mrb[0].mxu0 %v1304
  %v1408 = vpop.f32.mrb[0].mxu0
  %v1409 = vadd.f32 0.0, %v1408
  %v1410 = vpop.f32.mrb[0].mxu0
  %v1411 = vadd.f32 0.0, %v1410
  %1412 = vmatprep.mubr.f32.mxu0 0.0
  %1413 = vmatmul.mubr.f32.gmra.mrb[0].mxu0 %v1307
  %v1414 = vpop.f32.mrb[0].mxu0
  %v1415 = vadd.f32 0.0, %v1414
  %v1416 = vpop.f32.mrb[0].mxu0
  %v1417 = vadd.f32 0.0, %v1416
  %1418 = vmatprep.mubr.f32.mxu0 0.0
  %1419 = vmatmul.mubr.f32.gmra.mrb[0].mxu0 %v1310
  %v1420 = vpop.f32.mrb[0].mxu0
  %v1421 = vadd.f32 0.0, %v1420
  %v1422 = vpop.f32.mrb[0].mxu0
  %v1423 = vadd.f32 0.0, %v1422
  %1424 = vdwg.mxu0
  %v1425 = vadd.f32 %v1225, %v1379
  %v1426 = vadd.f32 %v1227, %v1381
  %v1427 = vadd.f32 %v1231, %v1385
  %v1428 = vadd.f32 %v1233, %v1387
  %v1429 = vadd.f32 %v1237, %v1391
  %v1430 = vadd.f32 %v1239, %v1393
  %v1431 = vadd.f32 %v1243, %v1397
  %v1432 = vadd.f32 %v1245, %v1399
  %v1433 = vadd.f32 %v1249, %v1403
  %v1434 = vadd.f32 %v1251, %v1405
  %v1435 = vadd.f32 %v1255, %v1409
  %v1436 = vadd.f32 %v1257, %v1411
  %v1437 = vadd.f32 %v1261, %v1415
  %v1438 = vadd.f32 %v1263, %v1417
  %v1439 = vadd.f32 %v1267, %v1421
  %v1440 = vadd.f32 %v1269, %v1423
  %v1441 = vld [vmem:[%s5] sm:$0x3]
  %v1443 = vlaneseq
  %v1444 = vshrl.u32 %v1443, 7
  %v1445 = vsub.s32 0, %v1444
  %v1446 = vrot.slane %v1441, %v1445
  %v1447 = vlaneseq
  %v1448 = vshrl.u32 %v1447, 7
  %v1449 = vsub.s32 1, %v1448
  %v1450 = vrot.slane %v1441, %v1449
  %v1453 = vadd.f32 %v1425, %v1446
  %v1454 = vadd.f32 %v1426, %v1450
  %v1455 = vadd.f32 %v1427, %v1446
  %v1456 = vadd.f32 %v1428, %v1450
  %v1457 = vadd.f32 %v1429, %v1446
  %v1458 = vadd.f32 %v1430, %v1450
  %v1459 = vadd.f32 %v1431, %v1446
  %v1460 = vadd.f32 %v1432, %v1450
  %v1461 = vadd.f32 %v1433, %v1446
  %v1462 = vadd.f32 %v1434, %v1450
  %v1463 = vadd.f32 %v1435, %v1446
  %v1464 = vadd.f32 %v1436, %v1450
  %v1465 = vadd.f32 %v1437, %v1446
  %v1466 = vadd.f32 %v1438, %v1450
  %v1467 = vadd.f32 %v1439, %v1446
  %v1468 = vadd.f32 %v1440, %v1450
  %v1469 = vpack.c.bf16 %v1455, %v1453
  %v1470 = vpack.c.bf16 %v1456, %v1454
  %v1471 = vpack.c.bf16 %v1459, %v1457
  %v1472 = vpack.c.bf16 %v1460, %v1458
  %v1473 = vpack.c.bf16 %v1463, %v1461
  %v1474 = vpack.c.bf16 %v1464, %v1462
  %v1475 = vpack.c.bf16 %v1467, %v1465
  %v1476 = vpack.c.bf16 %v1468, %v1466
  %v1485 = vunpack.c.l.b16 %v1469
  %v1486 = vunpack.c.l.b16 %v1470
  %v1487 = vunpack.c.h.b16 %v1469
  %v1488 = vunpack.c.h.b16 %v1470
  %v1489 = vunpack.c.l.b16 %v1471
  %v1490 = vunpack.c.l.b16 %v1472
  %v1491 = vunpack.c.h.b16 %v1471
  %v1492 = vunpack.c.h.b16 %v1472
  %v1493 = vunpack.c.l.b16 %v1473
  %v1494 = vunpack.c.l.b16 %v1474
  %v1495 = vunpack.c.h.b16 %v1473
  %v1496 = vunpack.c.h.b16 %v1474
  %v1497 = vunpack.c.l.b16 %v1475
  %v1498 = vunpack.c.l.b16 %v1476
  %v1499 = vunpack.c.h.b16 %v1475
  %v1500 = vunpack.c.h.b16 %v1476
  %v1501 = vpack.c.b16 %v1486, %v1485
  %v1502 = vpack.c.b16 %v1488, %v1487
  %v1503 = vpack.c.b16 %v1490, %v1489
  %v1504 = vpack.c.b16 %v1492, %v1491
  %v1505 = vpack.c.b16 %v1494, %v1493
  %v1506 = vpack.c.b16 %v1496, %v1495
  %v1507 = vpack.c.b16 %v1498, %v1497
  %v1508 = vpack.c.b16 %v1500, %v1499
  %1517 = vst [vmem:[%s6] sm:$0xff] %v1501
  %1518 = vst [vmem:[%s6 + $0x8] sm:$0xff] %v1502
  %1519 = vst [vmem:[%s6 + $0x10] sm:$0xff] %v1503
  %1520 = vst [vmem:[%s6 + $0x18] sm:$0xff] %v1504
  %1521 = vst [vmem:[%s6 + $0x20] sm:$0xff] %v1505
  %1522 = vst [vmem:[%s6 + $0x28] sm:$0xff] %v1506
  %1523 = vst [vmem:[%s6 + $0x30] sm:$0xff] %v1507
  %1524 = vst [vmem:[%s6 + $0x38] sm:$0xff] %v1508
  %v1525 = vadd.f32 %v1453, %v1455
  %v1526 = vadd.f32 %v1525, %v1457
  %v1527 = vadd.f32 %v1526, %v1459
  %v1528 = vadd.f32 %v1527, %v1461
  %v1529 = vadd.f32 %v1528, %v1463
  %v1530 = vadd.f32 %v1529, %v1465
  %v1531 = vadd.f32 %v1530, %v1467
  %v1532 = vrot.slane %v1531, 4
  %v1533 = vadd.f32 %v1531, %v1532
  %v1534 = vrot.slane %v1533, 2
  %v1535 = vadd.f32 %v1533, %v1534
  %v1536 = vrot.slane %v1535, 1
  %v1537 = vadd.f32 %v1535, %v1536
  %v1538 = vadd.f32 %v1454, %v1456
  %v1539 = vadd.f32 %v1538, %v1458
  %v1540 = vadd.f32 %v1539, %v1460
  %v1541 = vadd.f32 %v1540, %v1462
  %v1542 = vadd.f32 %v1541, %v1464
  %v1543 = vadd.f32 %v1542, %v1466
  %v1544 = vadd.f32 %v1543, %v1468
  %v1545 = vrot.slane %v1544, 4
  %v1546 = vadd.f32 %v1544, %v1545
  %v1547 = vrot.slane %v1546, 2
  %v1548 = vadd.f32 %v1546, %v1547
  %v1549 = vrot.slane %v1548, 1
  %v1550 = vadd.f32 %v1548, %v1549
  %v1553 = vcombine.low %v1537, %v1550
  %v1555 = vunpack.c.l.s4 1966171168
  %v1556 = vunpack.c.0.s8 %v1555
  %v1557 = vlaneseq
  %v1558 = vshrl.u32 %v1557, 7
  %v1559 = vsub.s32 %v1556, %v1558
  %v1560 = vrot.slane %v1553, %v1559
  %v1562 = vunpack.c.l.s4 1966171168
  %v1563 = vunpack.c.0.s8 %v1562
  %v1564 = vlaneseq
  %v1565 = vshrl.u32 %v1564, 7
  %v1566 = vsub.s32 %v1563, %v1565
  %v1567 = vrot.slane %v1560, %v1566
  %v1569 = vlaneseq
  %vm1570 = vcmp.ge.s32.totalorder %v1569, 0
  %vm1571 = vcmp.lt.s32.totalorder %v1569, 256
  %vm1572 = vmand %vm1570, %vm1571
  %1573 = vst.msk [vmem:[%s7] sm:$0x3] %vm1572, %v1567
  %v1574 = vmul.f32 %v1453, %v1453
  %v1575 = vmul.f32 %v1454, %v1454
  %v1576 = vmul.f32 %v1455, %v1455
  %v1577 = vmul.f32 %v1456, %v1456
  %v1578 = vmul.f32 %v1457, %v1457
  %v1579 = vmul.f32 %v1458, %v1458
  %v1580 = vmul.f32 %v1459, %v1459
  %v1581 = vmul.f32 %v1460, %v1460
  %v1582 = vmul.f32 %v1461, %v1461
  %v1583 = vmul.f32 %v1462, %v1462
  %v1584 = vmul.f32 %v1463, %v1463
  %v1585 = vmul.f32 %v1464, %v1464
  %v1586 = vmul.f32 %v1465, %v1465
  %v1587 = vmul.f32 %v1466, %v1466
  %v1588 = vmul.f32 %v1467, %v1467
  %v1589 = vmul.f32 %v1468, %v1468
  %v1590 = vadd.f32 %v1574, %v1576
  %v1591 = vadd.f32 %v1590, %v1578
  %v1592 = vadd.f32 %v1591, %v1580
  %v1593 = vadd.f32 %v1592, %v1582
  %v1594 = vadd.f32 %v1593, %v1584
  %v1595 = vadd.f32 %v1594, %v1586
  %v1596 = vadd.f32 %v1595, %v1588
  %v1597 = vrot.slane %v1596, 4
  %v1598 = vadd.f32 %v1596, %v1597
  %v1599 = vrot.slane %v1598, 2
  %v1600 = vadd.f32 %v1598, %v1599
  %v1601 = vrot.slane %v1600, 1
  %v1602 = vadd.f32 %v1600, %v1601
  %v1603 = vadd.f32 %v1575, %v1577
  %v1604 = vadd.f32 %v1603, %v1579
  %v1605 = vadd.f32 %v1604, %v1581
  %v1606 = vadd.f32 %v1605, %v1583
  %v1607 = vadd.f32 %v1606, %v1585
  %v1608 = vadd.f32 %v1607, %v1587
  %v1609 = vadd.f32 %v1608, %v1589
  %v1610 = vrot.slane %v1609, 4
  %v1611 = vadd.f32 %v1609, %v1610
  %v1612 = vrot.slane %v1611, 2
  %v1613 = vadd.f32 %v1611, %v1612
  %v1614 = vrot.slane %v1613, 1
  %v1615 = vadd.f32 %v1613, %v1614
  %v1618 = vcombine.low %v1602, %v1615
  %v1620 = vunpack.c.l.s4 1966171168
  %v1621 = vunpack.c.0.s8 %v1620
  %v1622 = vlaneseq
  %v1623 = vshrl.u32 %v1622, 7
  %v1624 = vsub.s32 %v1621, %v1623
  %v1625 = vrot.slane %v1618, %v1624
  %v1627 = vunpack.c.l.s4 1966171168
  %v1628 = vunpack.c.0.s8 %v1627
  %v1629 = vlaneseq
  %v1630 = vshrl.u32 %v1629, 7
  %v1631 = vsub.s32 %v1628, %v1630
  %v1632 = vrot.slane %v1625, %v1631
  %1634 = vst.msk [vmem:[%s8] sm:$0x3] %vm1572, %v1632
  // Predicated region
  $region26: #{double_upconv_unet_forward.1} parent=0 // pred_check
    _
  $region27: #{double_upconv_unet_forward.1} parent=0 // pred_check_branch
    %1636 = sbr.rel (0) target = $region29
  $region28: #{double_upconv_unet_forward.1} parent=0 // pred_region
    _
  $region29: #{double_upconv_unet_forward.1} parent=0 // pred_fallthru
    _
  // Predicated region
  $region30: #{double_upconv_unet_forward.1} parent=0 // pred_check
    _
  $region31: #{double_upconv_unet_forward.1} parent=0 // pred_check_branch
    %1638 = sbr.rel (0) target = $region33
  $region32: #{double_upconv_unet_forward.1} parent=0 // pred_region
    _
  $region33: #{double_upconv_unet_forward.1} parent=0 // pred_fallthru
    _
  // Predicated region
  $region34: #{double_upconv_unet_forward.1} parent=0 // pred_check
    _
  $region35: #{double_upconv_unet_forward.1} parent=0 // pred_check_branch
    %1640 = sbr.rel (0) target = $region37
  $region36: #{double_upconv_unet_forward.1} parent=0 // pred_region
    _
  $region37: #{double_upconv_unet_forward.1} parent=0 // pred_fallthru
    _
  // Predicated region
  $region38: #{double_upconv_unet_forward.1} parent=0 // pred_check
    _
  $region39: #{double_upconv_unet_forward.1} parent=0 // pred_check_branch
    %1642 = sbr.rel (0) target = $region41
  $region40: #{double_upconv_unet_forward.1} parent=0 // pred_region
    _
  $region41: #{double_upconv_unet_forward.1} parent=0 // pred_fallthru
    _
  // Predicated region
  $region42: #{double_upconv_unet_forward.1} parent=0 // pred_check
    _
  $region43: #{double_upconv_unet_forward.1} parent=0 // pred_check_branch
    %1644 = sbr.rel (0) target = $region45
  $region44: #{double_upconv_unet_forward.1} parent=0 // pred_region
    _
  $region45: #{double_upconv_unet_forward.1} parent=0 // pred_fallthru
    _
  // Predicated region
  $region46: #{double_upconv_unet_forward.1} parent=0 // pred_check
    _
  $region47: #{double_upconv_unet_forward.1} parent=0 // pred_check_branch
    %1646 = sbr.rel (0) target = $region49
  $region48: #{double_upconv_unet_forward.1} parent=0 // pred_region
    _
  $region49: #{double_upconv_unet_forward.1} parent=0 // pred_fallthru
    _

</llo_original>
